<compile_context>
chip_gen: v7x
topology: tpu7x:2x2x1
jax: 0.10.0
libtpu: 0.0.40
codegen_flags: <defaults>
</compile_context>

<pallas_src>
import math

import jax
import jax.numpy as jnp
from jax.experimental import pallas as pl
from jax.experimental.pallas import tpu as pltpu

_EPS = 1e-5
_INV_SQRT2 = 1.0 / math.sqrt(2.0)


def _gelu_exact(v):
    # exact (erf-based) GELU, matching torch.nn.GELU() / F.gelu defaults
    return 0.5 * v * (1.0 + jax.lax.erf(v * _INV_SQRT2))


def _make_double_conv_kernel(HW, HWp, W, Cin, Cmid, Cout, residual):
    padded = HWp != HW
    # Static tap table: lane-roll amount so result[p] = x[p + ddy*W + ddx].
    taps = []
    for dy in range(3):
        for dx in range(3):
            ddy, ddx = dy - 1, dx - 1
            taps.append((-(ddy * W + ddx)) % HWp)
    center = 4  # (ddy, ddx) == (0, 0)

    def kernel(x_ref, m_ref, w1_ref, g1_ref, b1_ref, w2_ref, g2_ref, b2_ref,
               o_ref):
        masks = m_ref[...]                      # (9, HWp) f32 {0,1}

        def conv3x3(inp_f32, w_ref):
            # 9 per-tap matmuls accumulated in f32; taps produced with lane
            # rolls (XLU slot) + precomputed border masks, cast to bf16 for
            # the MXU.  No patch scratch, no patch stores.
            acc = None
            for k, shift in enumerate(taps):
                shifted = inp_f32 if shift == 0 else pltpu.roll(
                    inp_f32, shift=shift, axis=1)
                if k == center and not padded:
                    tap = shifted.astype(jnp.bfloat16)       # mask is all-ones
                else:
                    tap = (shifted * masks[k:k + 1, :]).astype(jnp.bfloat16)
                part = jnp.dot(w_ref[k], tap,
                               preferred_element_type=jnp.float32)
                acc = part if acc is None else acc + part
            return acc                                       # (cout, HWp) f32

        def group_norm(y, g_ref, b_ref, n_channels):
            # GroupNorm(num_groups=1): per-sample stats over channels+spatial.
            # Padded lanes of y are exactly zero (every tap is masked there),
            # so they do not perturb the mean; drop them from the variance sum
            # and divide by the true element count.
            n = float(n_channels * HW)
            mean = jnp.sum(y) / n
            d = y - mean
            dd = d * d
            if padded:
                dd = dd * masks[center:center + 1, :]
            var = jnp.sum(dd) / n
            inv = jax.lax.rsqrt(var + _EPS)
            # per-channel affine broadcasts along lanes (free in this layout)
            return d * (inv * g_ref[...]) + b_ref[...]

        h1 = conv3x3(x_ref[0], w1_ref)                       # (Cmid, HWp)
        h1 = _gelu_exact(group_norm(h1, g1_ref, b1_ref, Cmid))
        h2 = conv3x3(h1, w2_ref)                             # (Cout, HWp)
        h2 = group_norm(h2, g2_ref, b2_ref, Cout)
        if residual:
            # re-read x here instead of keeping it live across both convs
            h2 = _gelu_exact(x_ref[0] + h2)                  # Cin == Cout
        o_ref[0] = h2                                        # lane-dense store

    return kernel


def _vmem_limit_bytes():
    # Generation-aware scoped-VMEM limit: ~3/4 of physical capacity
    # (96 MiB on v5e/v6e, 48 MiB on v7x), clamped to a sane range.
    try:
        cap = pltpu.get_tpu_info().vmem_capacity_bytes
    except Exception:  # not on TPU / API unavailable
        cap = 64 * 1024 * 1024
    return int(max(32 * 1024 * 1024, min(cap * 3 // 4, 100 * 1024 * 1024)))


def double_conv_pallas(x_nchw, w1, g1, b1, w2, g2, b2, *, residual=False):
    """x_nchw: (B, Cin, H, W); w1: (3,3,Cin,Cmid) HWIO; w2: (3,3,Cmid,Cout)."""
    x_nchw = x_nchw.astype(jnp.float32)
    B, Cin, H, W = x_nchw.shape
    Cmid = w1.shape[3]
    Cout = w2.shape[3]
    if residual and Cin != Cout:
        raise ValueError("residual=True requires in_channels == out_channels")
    HW = H * W
    HWp = ((HW + 127) // 128) * 128            # lane-dense spatial extent

    # NCHW -> (B, C, H*W) is a free row-major reshape; zero-pad lanes if needed.
    x = x_nchw.reshape(B, Cin, HW)
    if HWp != HW:
        x = jnp.pad(x, ((0, 0), (0, 0), (0, HWp - HW)))

    # Per-tap weights in bf16: (9, Cout, Cin), tap index k = dy*3 + dx.
    wt1 = jnp.transpose(w1.astype(jnp.bfloat16).reshape(9, Cin, Cmid), (0, 2, 1))
    wt2 = jnp.transpose(w2.astype(jnp.bfloat16).reshape(9, Cmid, Cout), (0, 2, 1))

    # Precomputed border/padding masks, shared by both convs and all samples.
    pos = jnp.arange(HWp, dtype=jnp.int32)
    col = pos % W
    row = pos // W
    in_img = pos < HW
    mask_rows = []
    for dy in (-1, 0, 1):
        for dx in (-1, 0, 1):
            mask_rows.append(in_img & (col + dx >= 0) & (col + dx < W)
                             & (row + dy >= 0) & (row + dy < H))
    masks = jnp.stack(mask_rows).astype(jnp.float32)          # (9, HWp)

    kernel = _make_double_conv_kernel(HW, HWp, W, Cin, Cmid, Cout, residual)

    flops = 2 * B * HWp * 9 * (Cin * Cmid + Cmid * Cout)
    transcendentals = B * HWp * (Cmid + (Cout if residual else 0))
    bytes_accessed = 4 * B * HWp * (Cin + Cout) + 4 * 9 * HWp \
        + 2 * 9 * (Cin * Cmid + Cmid * Cout) + 8 * (Cmid + Cout)

    out = pl.pallas_call(
        kernel,
        out_shape=jax.ShapeDtypeStruct((B, Cout, HWp), jnp.float32),
        grid_spec=pltpu.PrefetchScalarGridSpec(
            num_scalar_prefetch=0,
            grid=(B,),
            in_specs=[
                pl.BlockSpec((1, Cin, HWp), lambda b: (b, 0, 0)),
                pl.BlockSpec((9, HWp), lambda b: (0, 0)),
                pl.BlockSpec((9, Cmid, Cin), lambda b: (0, 0, 0)),
                pl.BlockSpec((Cmid, 1), lambda b: (0, 0)),
                pl.BlockSpec((Cmid, 1), lambda b: (0, 0)),
                pl.BlockSpec((9, Cout, Cmid), lambda b: (0, 0, 0)),
                pl.BlockSpec((Cout, 1), lambda b: (0, 0)),
                pl.BlockSpec((Cout, 1), lambda b: (0, 0)),
            ],
            out_specs=pl.BlockSpec((1, Cout, HWp), lambda b: (b, 0, 0))),
        compiler_params=pltpu.CompilerParams(
            dimension_semantics=("parallel",),
            vmem_limit_bytes=_vmem_limit_bytes()),
        cost_estimate=pl.CostEstimate(
            flops=flops,
            transcendentals=transcendentals,
            bytes_accessed=bytes_accessed),
    )(x,
      masks,
      wt1,
      g1.reshape(Cmid, 1).astype(jnp.float32),
      b1.reshape(Cmid, 1).astype(jnp.float32),
      wt2,
      g2.reshape(Cout, 1).astype(jnp.float32),
      b2.reshape(Cout, 1).astype(jnp.float32))

    if HWp != HW:
        out = out[:, :, :HW]
    return out.reshape(B, Cout, H, W)          # free reshape back to NCHW


def _ref_double_conv(x_nchw, w1, g1, b1, w2, g2, b2, *, residual=False):
    """Pure-JAX f32 reference (NHWC internally), for correctness checking."""
    x = jnp.transpose(x_nchw, (0, 2, 3, 1)).astype(jnp.float32)

    def conv(inp, w):
        return jax.lax.conv_general_dilated(
            inp, w.astype(jnp.float32), window_strides=(1, 1), padding="SAME",
            dimension_numbers=("NHWC", "HWIO", "NHWC"))

    def gn(y, g, b):
        mean = jnp.mean(y, axis=(1, 2, 3), keepdims=True)
        var = jnp.mean((y - mean) ** 2, axis=(1, 2, 3), keepdims=True)
        return (y - mean) * jax.lax.rsqrt(var + _EPS) * g + b

    h = _gelu_exact(gn(conv(x, w1), g1, b1))
    h = gn(conv(h, w2), g2, b2)
    if residual:
        h = _gelu_exact(x + h)
    return jnp.transpose(h, (0, 3, 1, 2))


def _make_params(key, cin, cmid, cout):
    k1, k2, k3, k4, k5, k6 = jax.random.split(key, 6)
    w1 = 0.1 * jax.random.normal(k1, (3, 3, cin, cmid), jnp.float32)
    w2 = 0.1 * jax.random.normal(k2, (3, 3, cmid, cout), jnp.float32)
    g1 = 1.0 + 0.05 * jax.random.normal(k3, (cmid,), jnp.float32)
    b1 = 0.05 * jax.random.normal(k4, (cmid,), jnp.float32)
    g2 = 1.0 + 0.05 * jax.random.normal(k5, (cout,), jnp.float32)
    b2 = 0.05 * jax.random.normal(k6, (cout,), jnp.float32)
    return w1, g1, b1, w2, g2, b2


def _check(out, ref):
    # bf16 MXU inputs (f32 accumulation) -> loosened tolerance vs f32 reference
    assert jnp.allclose(out, ref, atol=1e-1, rtol=1e-1)
    rel = jnp.linalg.norm(out - ref) / jnp.linalg.norm(ref)
    assert float(rel) < 5e-2


if __name__ == "__main__":
    key = jax.random.PRNGKey(0)

    # Case 1: residual=False, in=4 -> mid=out=8, spatial 16x16, batch 2
    kx, kp = jax.random.split(key)
    x = jax.random.normal(kx, (2, 4, 16, 16), jnp.float32)       # NCHW
    params = _make_params(kp, cin=4, cmid=8, cout=8)
    out = double_conv_pallas(x, *params, residual=False)
    jax.block_until_ready(out)
    ref = _ref_double_conv(x, *params, residual=False)
    assert out.shape == (2, 8, 16, 16)
    _check(out, ref)

    # Case 2: residual=True, in=out=4, mid=8
    kx2, kp2 = jax.random.split(kp)
    x2 = jax.random.normal(kx2, (2, 4, 16, 16), jnp.float32)     # NCHW
    params2 = _make_params(kp2, cin=4, cmid=8, cout=4)
    out2 = double_conv_pallas(x2, *params2, residual=True)
    jax.block_until_ready(out2)
    ref2 = _ref_double_conv(x2, *params2, residual=True)
    assert out2.shape == (2, 4, 16, 16)
    _check(out2, ref2)

    print("KERNEL_OK")
</pallas_src>

<mosaic_0001>
module attributes {stable_mosaic.version = 11 : i64} {
  func.func @kernel(%arg0: i32, %arg1: memref<1x4x256xf32, #tpu.memory_space<vmem>>, %arg2: memref<9x256xf32, #tpu.memory_space<vmem>>, %arg3: memref<9x8x4xbf16, #tpu.memory_space<vmem>>, %arg4: memref<8x1xf32, #tpu.memory_space<vmem>>, %arg5: memref<8x1xf32, #tpu.memory_space<vmem>>, %arg6: memref<9x8x8xbf16, #tpu.memory_space<vmem>>, %arg7: memref<8x1xf32, #tpu.memory_space<vmem>>, %arg8: memref<8x1xf32, #tpu.memory_space<vmem>>, %arg9: memref<1x8x256xf32, #tpu.memory_space<vmem>>) attributes {dimension_semantics = [#tpu.dimension_semantics<parallel>], iteration_bounds = array<i64: 2>, scalar_prefetch = 0 : i64, scratch_operands = 0 : i64, tpu.core_type = #tpu.core_type<tc>, window_params = [{transform_indices = @transform_0, window_bounds = array<i64: 1, 4, 256>}, {pipeline_mode = #tpu.pipeline_mode<synchronous>, transform_indices = @transform_1, window_bounds = array<i64: 9, 256>}, {pipeline_mode = #tpu.pipeline_mode<synchronous>, transform_indices = @transform_2, window_bounds = array<i64: 9, 8, 4>}, {pipeline_mode = #tpu.pipeline_mode<synchronous>, transform_indices = @transform_3, window_bounds = array<i64: 8, 1>}, {pipeline_mode = #tpu.pipeline_mode<synchronous>, transform_indices = @transform_4, window_bounds = array<i64: 8, 1>}, {pipeline_mode = #tpu.pipeline_mode<synchronous>, transform_indices = @transform_5, window_bounds = array<i64: 9, 8, 8>}, {pipeline_mode = #tpu.pipeline_mode<synchronous>, transform_indices = @transform_6, window_bounds = array<i64: 8, 1>}, {pipeline_mode = #tpu.pipeline_mode<synchronous>, transform_indices = @transform_7, window_bounds = array<i64: 8, 1>}, {transform_indices = @transform_8, window_bounds = array<i64: 1, 8, 256>}]} {
    %c0 = arith.constant 0 : index
    %c0_0 = arith.constant 0 : index
    %0 = vector.load %arg2[%c0, %c0_0] : memref<9x256xf32, #tpu.memory_space<vmem>>, vector<9x256xf32>
    %c0_1 = arith.constant 0 : index
    %c0_2 = arith.constant 0 : index
    %c0_3 = arith.constant 0 : index
    %1 = vector.load %arg1[%c0_1, %c0_2, %c0_3] : memref<1x4x256xf32, #tpu.memory_space<vmem>>, vector<1x4x256xf32>
    %2 = vector.shape_cast %1 : vector<1x4x256xf32> to vector<4x256xf32>
    %c17_i32 = arith.constant 17 : i32
    %3 = tpu.dynamic_rotate %2 by %c17_i32 dim 1 : vector<4x256xf32>, i32 -> vector<4x256xf32>
    %4 = vector.extract_strided_slice %0 {offsets = [0, 0], sizes = [1, 256], strides = [1, 1]} : vector<9x256xf32> to vector<1x256xf32>
    %5 = vector.broadcast %4 : vector<1x256xf32> to vector<4x256xf32>
    %6 = arith.mulf %3, %5 : vector<4x256xf32>
    %7 = arith.truncf %6 : vector<4x256xf32> to vector<4x256xbf16>
    %c0_4 = arith.constant 0 : index
    %c0_5 = arith.constant 0 : index
    %c0_6 = arith.constant 0 : index
    %8 = vector.load %arg3[%c0_4, %c0_5, %c0_6] : memref<9x8x4xbf16, #tpu.memory_space<vmem>>, vector<1x8x4xbf16>
    %9 = vector.shape_cast %8 : vector<1x8x4xbf16> to vector<8x4xbf16>
    %cst = arith.constant dense<0.000000e+00> : vector<8x256xf32>
    %10 = tpu.matmul %9, %7, %cst {dimension_numbers = #tpu.dot_dimension_numbers<[1], [0], [0], [1], [0, 0, 1, 1], [], []>} : vector<8x4xbf16>, vector<4x256xbf16>, vector<8x256xf32> -> vector<8x256xf32>
    %c16_i32 = arith.constant 16 : i32
    %11 = tpu.dynamic_rotate %2 by %c16_i32 dim 1 : vector<4x256xf32>, i32 -> vector<4x256xf32>
    %12 = vector.extract_strided_slice %0 {offsets = [1, 0], sizes = [1, 256], strides = [1, 1]} : vector<9x256xf32> to vector<1x256xf32>
    %13 = vector.broadcast %12 : vector<1x256xf32> to vector<4x256xf32>
    %14 = arith.mulf %11, %13 : vector<4x256xf32>
    %15 = arith.truncf %14 : vector<4x256xf32> to vector<4x256xbf16>
    %c1 = arith.constant 1 : index
    %c0_7 = arith.constant 0 : index
    %c0_8 = arith.constant 0 : index
    %16 = vector.load %arg3[%c1, %c0_7, %c0_8] : memref<9x8x4xbf16, #tpu.memory_space<vmem>>, vector<1x8x4xbf16>
    %17 = vector.shape_cast %16 : vector<1x8x4xbf16> to vector<8x4xbf16>
    %cst_9 = arith.constant dense<0.000000e+00> : vector<8x256xf32>
    %18 = tpu.matmul %17, %15, %cst_9 {dimension_numbers = #tpu.dot_dimension_numbers<[1], [0], [0], [1], [0, 0, 1, 1], [], []>} : vector<8x4xbf16>, vector<4x256xbf16>, vector<8x256xf32> -> vector<8x256xf32>
    %19 = arith.addf %10, %18 : vector<8x256xf32>
    %c15_i32 = arith.constant 15 : i32
    %20 = tpu.dynamic_rotate %2 by %c15_i32 dim 1 : vector<4x256xf32>, i32 -> vector<4x256xf32>
    %21 = vector.extract_strided_slice %0 {offsets = [2, 0], sizes = [1, 256], strides = [1, 1]} : vector<9x256xf32> to vector<1x256xf32>
    %22 = vector.broadcast %21 : vector<1x256xf32> to vector<4x256xf32>
    %23 = arith.mulf %20, %22 : vector<4x256xf32>
    %24 = arith.truncf %23 : vector<4x256xf32> to vector<4x256xbf16>
    %c2 = arith.constant 2 : index
    %c0_10 = arith.constant 0 : index
    %c0_11 = arith.constant 0 : index
    %25 = vector.load %arg3[%c2, %c0_10, %c0_11] : memref<9x8x4xbf16, #tpu.memory_space<vmem>>, vector<1x8x4xbf16>
    %26 = vector.shape_cast %25 : vector<1x8x4xbf16> to vector<8x4xbf16>
    %cst_12 = arith.constant dense<0.000000e+00> : vector<8x256xf32>
    %27 = tpu.matmul %26, %24, %cst_12 {dimension_numbers = #tpu.dot_dimension_numbers<[1], [0], [0], [1], [0, 0, 1, 1], [], []>} : vector<8x4xbf16>, vector<4x256xbf16>, vector<8x256xf32> -> vector<8x256xf32>
    %28 = arith.addf %19, %27 : vector<8x256xf32>
    %c1_i32 = arith.constant 1 : i32
    %29 = tpu.dynamic_rotate %2 by %c1_i32 dim 1 : vector<4x256xf32>, i32 -> vector<4x256xf32>
    %30 = vector.extract_strided_slice %0 {offsets = [3, 0], sizes = [1, 256], strides = [1, 1]} : vector<9x256xf32> to vector<1x256xf32>
    %31 = vector.broadcast %30 : vector<1x256xf32> to vector<4x256xf32>
    %32 = arith.mulf %29, %31 : vector<4x256xf32>
    %33 = arith.truncf %32 : vector<4x256xf32> to vector<4x256xbf16>
    %c3 = arith.constant 3 : index
    %c0_13 = arith.constant 0 : index
    %c0_14 = arith.constant 0 : index
    %34 = vector.load %arg3[%c3, %c0_13, %c0_14] : memref<9x8x4xbf16, #tpu.memory_space<vmem>>, vector<1x8x4xbf16>
    %35 = vector.shape_cast %34 : vector<1x8x4xbf16> to vector<8x4xbf16>
    %cst_15 = arith.constant dense<0.000000e+00> : vector<8x256xf32>
    %36 = tpu.matmul %35, %33, %cst_15 {dimension_numbers = #tpu.dot_dimension_numbers<[1], [0], [0], [1], [0, 0, 1, 1], [], []>} : vector<8x4xbf16>, vector<4x256xbf16>, vector<8x256xf32> -> vector<8x256xf32>
    %37 = arith.addf %28, %36 : vector<8x256xf32>
    %38 = arith.truncf %2 : vector<4x256xf32> to vector<4x256xbf16>
    %c4 = arith.constant 4 : index
    %c0_16 = arith.constant 0 : index
    %c0_17 = arith.constant 0 : index
    %39 = vector.load %arg3[%c4, %c0_16, %c0_17] : memref<9x8x4xbf16, #tpu.memory_space<vmem>>, vector<1x8x4xbf16>
    %40 = vector.shape_cast %39 : vector<1x8x4xbf16> to vector<8x4xbf16>
    %cst_18 = arith.constant dense<0.000000e+00> : vector<8x256xf32>
    %41 = tpu.matmul %40, %38, %cst_18 {dimension_numbers = #tpu.dot_dimension_numbers<[1], [0], [0], [1], [0, 0, 1, 1], [], []>} : vector<8x4xbf16>, vector<4x256xbf16>, vector<8x256xf32> -> vector<8x256xf32>
    %42 = arith.addf %37, %41 : vector<8x256xf32>
    %c255_i32 = arith.constant 255 : i32
    %43 = tpu.dynamic_rotate %2 by %c255_i32 dim 1 : vector<4x256xf32>, i32 -> vector<4x256xf32>
    %44 = vector.extract_strided_slice %0 {offsets = [5, 0], sizes = [1, 256], strides = [1, 1]} : vector<9x256xf32> to vector<1x256xf32>
    %45 = vector.broadcast %44 : vector<1x256xf32> to vector<4x256xf32>
    %46 = arith.mulf %43, %45 : vector<4x256xf32>
    %47 = arith.truncf %46 : vector<4x256xf32> to vector<4x256xbf16>
    %c5 = arith.constant 5 : index
    %c0_19 = arith.constant 0 : index
    %c0_20 = arith.constant 0 : index
    %48 = vector.load %arg3[%c5, %c0_19, %c0_20] : memref<9x8x4xbf16, #tpu.memory_space<vmem>>, vector<1x8x4xbf16>
    %49 = vector.shape_cast %48 : vector<1x8x4xbf16> to vector<8x4xbf16>
    %cst_21 = arith.constant dense<0.000000e+00> : vector<8x256xf32>
    %50 = tpu.matmul %49, %47, %cst_21 {dimension_numbers = #tpu.dot_dimension_numbers<[1], [0], [0], [1], [0, 0, 1, 1], [], []>} : vector<8x4xbf16>, vector<4x256xbf16>, vector<8x256xf32> -> vector<8x256xf32>
    %51 = arith.addf %42, %50 : vector<8x256xf32>
    %c241_i32 = arith.constant 241 : i32
    %52 = tpu.dynamic_rotate %2 by %c241_i32 dim 1 : vector<4x256xf32>, i32 -> vector<4x256xf32>
    %53 = vector.extract_strided_slice %0 {offsets = [6, 0], sizes = [1, 256], strides = [1, 1]} : vector<9x256xf32> to vector<1x256xf32>
    %54 = vector.broadcast %53 : vector<1x256xf32> to vector<4x256xf32>
    %55 = arith.mulf %52, %54 : vector<4x256xf32>
    %56 = arith.truncf %55 : vector<4x256xf32> to vector<4x256xbf16>
    %c6 = arith.constant 6 : index
    %c0_22 = arith.constant 0 : index
    %c0_23 = arith.constant 0 : index
    %57 = vector.load %arg3[%c6, %c0_22, %c0_23] : memref<9x8x4xbf16, #tpu.memory_space<vmem>>, vector<1x8x4xbf16>
    %58 = vector.shape_cast %57 : vector<1x8x4xbf16> to vector<8x4xbf16>
    %cst_24 = arith.constant dense<0.000000e+00> : vector<8x256xf32>
    %59 = tpu.matmul %58, %56, %cst_24 {dimension_numbers = #tpu.dot_dimension_numbers<[1], [0], [0], [1], [0, 0, 1, 1], [], []>} : vector<8x4xbf16>, vector<4x256xbf16>, vector<8x256xf32> -> vector<8x256xf32>
    %60 = arith.addf %51, %59 : vector<8x256xf32>
    %c240_i32 = arith.constant 240 : i32
    %61 = tpu.dynamic_rotate %2 by %c240_i32 dim 1 : vector<4x256xf32>, i32 -> vector<4x256xf32>
    %62 = vector.extract_strided_slice %0 {offsets = [7, 0], sizes = [1, 256], strides = [1, 1]} : vector<9x256xf32> to vector<1x256xf32>
    %63 = vector.broadcast %62 : vector<1x256xf32> to vector<4x256xf32>
    %64 = arith.mulf %61, %63 : vector<4x256xf32>
    %65 = arith.truncf %64 : vector<4x256xf32> to vector<4x256xbf16>
    %c7 = arith.constant 7 : index
    %c0_25 = arith.constant 0 : index
    %c0_26 = arith.constant 0 : index
    %66 = vector.load %arg3[%c7, %c0_25, %c0_26] : memref<9x8x4xbf16, #tpu.memory_space<vmem>>, vector<1x8x4xbf16>
    %67 = vector.shape_cast %66 : vector<1x8x4xbf16> to vector<8x4xbf16>
    %cst_27 = arith.constant dense<0.000000e+00> : vector<8x256xf32>
    %68 = tpu.matmul %67, %65, %cst_27 {dimension_numbers = #tpu.dot_dimension_numbers<[1], [0], [0], [1], [0, 0, 1, 1], [], []>} : vector<8x4xbf16>, vector<4x256xbf16>, vector<8x256xf32> -> vector<8x256xf32>
    %69 = arith.addf %60, %68 : vector<8x256xf32>
    %c239_i32 = arith.constant 239 : i32
    %70 = tpu.dynamic_rotate %2 by %c239_i32 dim 1 : vector<4x256xf32>, i32 -> vector<4x256xf32>
    %71 = vector.extract_strided_slice %0 {offsets = [8, 0], sizes = [1, 256], strides = [1, 1]} : vector<9x256xf32> to vector<1x256xf32>
    %72 = vector.broadcast %71 : vector<1x256xf32> to vector<4x256xf32>
    %73 = arith.mulf %70, %72 : vector<4x256xf32>
    %74 = arith.truncf %73 : vector<4x256xf32> to vector<4x256xbf16>
    %c8 = arith.constant 8 : index
    %c0_28 = arith.constant 0 : index
    %c0_29 = arith.constant 0 : index
    %75 = vector.load %arg3[%c8, %c0_28, %c0_29] : memref<9x8x4xbf16, #tpu.memory_space<vmem>>, vector<1x8x4xbf16>
    %76 = vector.shape_cast %75 : vector<1x8x4xbf16> to vector<8x4xbf16>
    %cst_30 = arith.constant dense<0.000000e+00> : vector<8x256xf32>
    %77 = tpu.matmul %76, %74, %cst_30 {dimension_numbers = #tpu.dot_dimension_numbers<[1], [0], [0], [1], [0, 0, 1, 1], [], []>} : vector<8x4xbf16>, vector<4x256xbf16>, vector<8x256xf32> -> vector<8x256xf32>
    %78 = arith.addf %69, %77 : vector<8x256xf32>
    %79 = vector.shape_cast %78 : vector<8x256xf32> to vector<1x8x256xf32>
    %cst_31 = arith.constant dense<0.000000e+00> : vector<1xf32>
    %80 = vector.multi_reduction <add>, %79, %cst_31 [1, 2] : vector<1x8x256xf32> to vector<1xf32>
    %81 = vector.shape_cast %80 : vector<1xf32> to vector<1x1x1xf32>
    %82 = vector.extract %81[0, 0, 0] : f32 from vector<1x1x1xf32>
    %cst_32 = arith.constant 2.048000e+03 : f32
    %83 = arith.divf %82, %cst_32 : f32
    %84 = vector.broadcast %83 : f32 to vector<8x256xf32>
    %85 = arith.subf %78, %84 : vector<8x256xf32>
    %86 = arith.mulf %85, %85 : vector<8x256xf32>
    %87 = vector.shape_cast %86 : vector<8x256xf32> to vector<1x8x256xf32>
    %cst_33 = arith.constant dense<0.000000e+00> : vector<1xf32>
    %88 = vector.multi_reduction <add>, %87, %cst_33 [1, 2] : vector<1x8x256xf32> to vector<1xf32>
    %89 = vector.shape_cast %88 : vector<1xf32> to vector<1x1x1xf32>
    %90 = vector.extract %89[0, 0, 0] : f32 from vector<1x1x1xf32>
    %cst_34 = arith.constant 2.048000e+03 : f32
    %91 = arith.divf %90, %cst_34 : f32
    %cst_35 = arith.constant 9.99999974E-6 : f32
    %92 = arith.addf %91, %cst_35 : f32
    %93 = math.rsqrt %92 : f32
    %c0_36 = arith.constant 0 : index
    %c0_37 = arith.constant 0 : index
    %94 = vector.load %arg4[%c0_36, %c0_37] : memref<8x1xf32, #tpu.memory_space<vmem>>, vector<8x1xf32>
    %95 = vector.broadcast %93 : f32 to vector<8x1xf32>
    %96 = arith.mulf %95, %94 : vector<8x1xf32>
    %97 = vector.broadcast %96 : vector<8x1xf32> to vector<8x256xf32>
    %98 = arith.mulf %85, %97 : vector<8x256xf32>
    %c0_38 = arith.constant 0 : index
    %c0_39 = arith.constant 0 : index
    %99 = vector.load %arg5[%c0_38, %c0_39] : memref<8x1xf32, #tpu.memory_space<vmem>>, vector<8x1xf32>
    %100 = vector.broadcast %99 : vector<8x1xf32> to vector<8x256xf32>
    %101 = arith.addf %98, %100 : vector<8x256xf32>
    %cst_40 = arith.constant 5.000000e-01 : f32
    %102 = vector.broadcast %cst_40 : f32 to vector<8x256xf32>
    %103 = arith.mulf %102, %101 : vector<8x256xf32>
    %cst_41 = arith.constant 0.707106769 : f32
    %104 = vector.broadcast %cst_41 : f32 to vector<8x256xf32>
    %105 = arith.mulf %101, %104 : vector<8x256xf32>
    %106 = math.erf %105 : vector<8x256xf32>
    %cst_42 = arith.constant 1.000000e+00 : f32
    %107 = vector.broadcast %cst_42 : f32 to vector<8x256xf32>
    %108 = arith.addf %107, %106 : vector<8x256xf32>
    %109 = arith.mulf %103, %108 : vector<8x256xf32>
    %c17_i32_43 = arith.constant 17 : i32
    %110 = tpu.dynamic_rotate %109 by %c17_i32_43 dim 1 : vector<8x256xf32>, i32 -> vector<8x256xf32>
    %111 = vector.extract_strided_slice %0 {offsets = [0, 0], sizes = [1, 256], strides = [1, 1]} : vector<9x256xf32> to vector<1x256xf32>
    %112 = vector.broadcast %111 : vector<1x256xf32> to vector<8x256xf32>
    %113 = arith.mulf %110, %112 : vector<8x256xf32>
    %114 = arith.truncf %113 : vector<8x256xf32> to vector<8x256xbf16>
    %c0_44 = arith.constant 0 : index
    %c0_45 = arith.constant 0 : index
    %c0_46 = arith.constant 0 : index
    %115 = vector.load %arg6[%c0_44, %c0_45, %c0_46] : memref<9x8x8xbf16, #tpu.memory_space<vmem>>, vector<1x8x8xbf16>
    %116 = vector.shape_cast %115 : vector<1x8x8xbf16> to vector<8x8xbf16>
    %cst_47 = arith.constant dense<0.000000e+00> : vector<8x256xf32>
    %117 = tpu.matmul %116, %114, %cst_47 {dimension_numbers = #tpu.dot_dimension_numbers<[1], [0], [0], [1], [0, 0, 1, 1], [], []>} : vector<8x8xbf16>, vector<8x256xbf16>, vector<8x256xf32> -> vector<8x256xf32>
    %c16_i32_48 = arith.constant 16 : i32
    %118 = tpu.dynamic_rotate %109 by %c16_i32_48 dim 1 : vector<8x256xf32>, i32 -> vector<8x256xf32>
    %119 = vector.extract_strided_slice %0 {offsets = [1, 0], sizes = [1, 256], strides = [1, 1]} : vector<9x256xf32> to vector<1x256xf32>
    %120 = vector.broadcast %119 : vector<1x256xf32> to vector<8x256xf32>
    %121 = arith.mulf %118, %120 : vector<8x256xf32>
    %122 = arith.truncf %121 : vector<8x256xf32> to vector<8x256xbf16>
    %c1_49 = arith.constant 1 : index
    %c0_50 = arith.constant 0 : index
    %c0_51 = arith.constant 0 : index
    %123 = vector.load %arg6[%c1_49, %c0_50, %c0_51] : memref<9x8x8xbf16, #tpu.memory_space<vmem>>, vector<1x8x8xbf16>
    %124 = vector.shape_cast %123 : vector<1x8x8xbf16> to vector<8x8xbf16>
    %cst_52 = arith.constant dense<0.000000e+00> : vector<8x256xf32>
    %125 = tpu.matmul %124, %122, %cst_52 {dimension_numbers = #tpu.dot_dimension_numbers<[1], [0], [0], [1], [0, 0, 1, 1], [], []>} : vector<8x8xbf16>, vector<8x256xbf16>, vector<8x256xf32> -> vector<8x256xf32>
    %126 = arith.addf %117, %125 : vector<8x256xf32>
    %c15_i32_53 = arith.constant 15 : i32
    %127 = tpu.dynamic_rotate %109 by %c15_i32_53 dim 1 : vector<8x256xf32>, i32 -> vector<8x256xf32>
    %128 = vector.extract_strided_slice %0 {offsets = [2, 0], sizes = [1, 256], strides = [1, 1]} : vector<9x256xf32> to vector<1x256xf32>
    %129 = vector.broadcast %128 : vector<1x256xf32> to vector<8x256xf32>
    %130 = arith.mulf %127, %129 : vector<8x256xf32>
    %131 = arith.truncf %130 : vector<8x256xf32> to vector<8x256xbf16>
    %c2_54 = arith.constant 2 : index
    %c0_55 = arith.constant 0 : index
    %c0_56 = arith.constant 0 : index
    %132 = vector.load %arg6[%c2_54, %c0_55, %c0_56] : memref<9x8x8xbf16, #tpu.memory_space<vmem>>, vector<1x8x8xbf16>
    %133 = vector.shape_cast %132 : vector<1x8x8xbf16> to vector<8x8xbf16>
    %cst_57 = arith.constant dense<0.000000e+00> : vector<8x256xf32>
    %134 = tpu.matmul %133, %131, %cst_57 {dimension_numbers = #tpu.dot_dimension_numbers<[1], [0], [0], [1], [0, 0, 1, 1], [], []>} : vector<8x8xbf16>, vector<8x256xbf16>, vector<8x256xf32> -> vector<8x256xf32>
    %135 = arith.addf %126, %134 : vector<8x256xf32>
    %c1_i32_58 = arith.constant 1 : i32
    %136 = tpu.dynamic_rotate %109 by %c1_i32_58 dim 1 : vector<8x256xf32>, i32 -> vector<8x256xf32>
    %137 = vector.extract_strided_slice %0 {offsets = [3, 0], sizes = [1, 256], strides = [1, 1]} : vector<9x256xf32> to vector<1x256xf32>
    %138 = vector.broadcast %137 : vector<1x256xf32> to vector<8x256xf32>
    %139 = arith.mulf %136, %138 : vector<8x256xf32>
    %140 = arith.truncf %139 : vector<8x256xf32> to vector<8x256xbf16>
    %c3_59 = arith.constant 3 : index
    %c0_60 = arith.constant 0 : index
    %c0_61 = arith.constant 0 : index
    %141 = vector.load %arg6[%c3_59, %c0_60, %c0_61] : memref<9x8x8xbf16, #tpu.memory_space<vmem>>, vector<1x8x8xbf16>
    %142 = vector.shape_cast %141 : vector<1x8x8xbf16> to vector<8x8xbf16>
    %cst_62 = arith.constant dense<0.000000e+00> : vector<8x256xf32>
    %143 = tpu.matmul %142, %140, %cst_62 {dimension_numbers = #tpu.dot_dimension_numbers<[1], [0], [0], [1], [0, 0, 1, 1], [], []>} : vector<8x8xbf16>, vector<8x256xbf16>, vector<8x256xf32> -> vector<8x256xf32>
    %144 = arith.addf %135, %143 : vector<8x256xf32>
    %145 = arith.truncf %109 : vector<8x256xf32> to vector<8x256xbf16>
    %c4_63 = arith.constant 4 : index
    %c0_64 = arith.constant 0 : index
    %c0_65 = arith.constant 0 : index
    %146 = vector.load %arg6[%c4_63, %c0_64, %c0_65] : memref<9x8x8xbf16, #tpu.memory_space<vmem>>, vector<1x8x8xbf16>
    %147 = vector.shape_cast %146 : vector<1x8x8xbf16> to vector<8x8xbf16>
    %cst_66 = arith.constant dense<0.000000e+00> : vector<8x256xf32>
    %148 = tpu.matmul %147, %145, %cst_66 {dimension_numbers = #tpu.dot_dimension_numbers<[1], [0], [0], [1], [0, 0, 1, 1], [], []>} : vector<8x8xbf16>, vector<8x256xbf16>, vector<8x256xf32> -> vector<8x256xf32>
    %149 = arith.addf %144, %148 : vector<8x256xf32>
    %c255_i32_67 = arith.constant 255 : i32
    %150 = tpu.dynamic_rotate %109 by %c255_i32_67 dim 1 : vector<8x256xf32>, i32 -> vector<8x256xf32>
    %151 = vector.extract_strided_slice %0 {offsets = [5, 0], sizes = [1, 256], strides = [1, 1]} : vector<9x256xf32> to vector<1x256xf32>
    %152 = vector.broadcast %151 : vector<1x256xf32> to vector<8x256xf32>
    %153 = arith.mulf %150, %152 : vector<8x256xf32>
    %154 = arith.truncf %153 : vector<8x256xf32> to vector<8x256xbf16>
    %c5_68 = arith.constant 5 : index
    %c0_69 = arith.constant 0 : index
    %c0_70 = arith.constant 0 : index
    %155 = vector.load %arg6[%c5_68, %c0_69, %c0_70] : memref<9x8x8xbf16, #tpu.memory_space<vmem>>, vector<1x8x8xbf16>
    %156 = vector.shape_cast %155 : vector<1x8x8xbf16> to vector<8x8xbf16>
    %cst_71 = arith.constant dense<0.000000e+00> : vector<8x256xf32>
    %157 = tpu.matmul %156, %154, %cst_71 {dimension_numbers = #tpu.dot_dimension_numbers<[1], [0], [0], [1], [0, 0, 1, 1], [], []>} : vector<8x8xbf16>, vector<8x256xbf16>, vector<8x256xf32> -> vector<8x256xf32>
    %158 = arith.addf %149, %157 : vector<8x256xf32>
    %c241_i32_72 = arith.constant 241 : i32
    %159 = tpu.dynamic_rotate %109 by %c241_i32_72 dim 1 : vector<8x256xf32>, i32 -> vector<8x256xf32>
    %160 = vector.extract_strided_slice %0 {offsets = [6, 0], sizes = [1, 256], strides = [1, 1]} : vector<9x256xf32> to vector<1x256xf32>
    %161 = vector.broadcast %160 : vector<1x256xf32> to vector<8x256xf32>
    %162 = arith.mulf %159, %161 : vector<8x256xf32>
    %163 = arith.truncf %162 : vector<8x256xf32> to vector<8x256xbf16>
    %c6_73 = arith.constant 6 : index
    %c0_74 = arith.constant 0 : index
    %c0_75 = arith.constant 0 : index
    %164 = vector.load %arg6[%c6_73, %c0_74, %c0_75] : memref<9x8x8xbf16, #tpu.memory_space<vmem>>, vector<1x8x8xbf16>
    %165 = vector.shape_cast %164 : vector<1x8x8xbf16> to vector<8x8xbf16>
    %cst_76 = arith.constant dense<0.000000e+00> : vector<8x256xf32>
    %166 = tpu.matmul %165, %163, %cst_76 {dimension_numbers = #tpu.dot_dimension_numbers<[1], [0], [0], [1], [0, 0, 1, 1], [], []>} : vector<8x8xbf16>, vector<8x256xbf16>, vector<8x256xf32> -> vector<8x256xf32>
    %167 = arith.addf %158, %166 : vector<8x256xf32>
    %c240_i32_77 = arith.constant 240 : i32
    %168 = tpu.dynamic_rotate %109 by %c240_i32_77 dim 1 : vector<8x256xf32>, i32 -> vector<8x256xf32>
    %169 = vector.extract_strided_slice %0 {offsets = [7, 0], sizes = [1, 256], strides = [1, 1]} : vector<9x256xf32> to vector<1x256xf32>
    %170 = vector.broadcast %169 : vector<1x256xf32> to vector<8x256xf32>
    %171 = arith.mulf %168, %170 : vector<8x256xf32>
    %172 = arith.truncf %171 : vector<8x256xf32> to vector<8x256xbf16>
    %c7_78 = arith.constant 7 : index
    %c0_79 = arith.constant 0 : index
    %c0_80 = arith.constant 0 : index
    %173 = vector.load %arg6[%c7_78, %c0_79, %c0_80] : memref<9x8x8xbf16, #tpu.memory_space<vmem>>, vector<1x8x8xbf16>
    %174 = vector.shape_cast %173 : vector<1x8x8xbf16> to vector<8x8xbf16>
    %cst_81 = arith.constant dense<0.000000e+00> : vector<8x256xf32>
    %175 = tpu.matmul %174, %172, %cst_81 {dimension_numbers = #tpu.dot_dimension_numbers<[1], [0], [0], [1], [0, 0, 1, 1], [], []>} : vector<8x8xbf16>, vector<8x256xbf16>, vector<8x256xf32> -> vector<8x256xf32>
    %176 = arith.addf %167, %175 : vector<8x256xf32>
    %c239_i32_82 = arith.constant 239 : i32
    %177 = tpu.dynamic_rotate %109 by %c239_i32_82 dim 1 : vector<8x256xf32>, i32 -> vector<8x256xf32>
    %178 = vector.extract_strided_slice %0 {offsets = [8, 0], sizes = [1, 256], strides = [1, 1]} : vector<9x256xf32> to vector<1x256xf32>
    %179 = vector.broadcast %178 : vector<1x256xf32> to vector<8x256xf32>
    %180 = arith.mulf %177, %179 : vector<8x256xf32>
    %181 = arith.truncf %180 : vector<8x256xf32> to vector<8x256xbf16>
    %c8_83 = arith.constant 8 : index
    %c0_84 = arith.constant 0 : index
    %c0_85 = arith.constant 0 : index
    %182 = vector.load %arg6[%c8_83, %c0_84, %c0_85] : memref<9x8x8xbf16, #tpu.memory_space<vmem>>, vector<1x8x8xbf16>
    %183 = vector.shape_cast %182 : vector<1x8x8xbf16> to vector<8x8xbf16>
    %cst_86 = arith.constant dense<0.000000e+00> : vector<8x256xf32>
    %184 = tpu.matmul %183, %181, %cst_86 {dimension_numbers = #tpu.dot_dimension_numbers<[1], [0], [0], [1], [0, 0, 1, 1], [], []>} : vector<8x8xbf16>, vector<8x256xbf16>, vector<8x256xf32> -> vector<8x256xf32>
    %185 = arith.addf %176, %184 : vector<8x256xf32>
    %186 = vector.shape_cast %185 : vector<8x256xf32> to vector<1x8x256xf32>
    %cst_87 = arith.constant dense<0.000000e+00> : vector<1xf32>
    %187 = vector.multi_reduction <add>, %186, %cst_87 [1, 2] : vector<1x8x256xf32> to vector<1xf32>
    %188 = vector.shape_cast %187 : vector<1xf32> to vector<1x1x1xf32>
    %189 = vector.extract %188[0, 0, 0] : f32 from vector<1x1x1xf32>
    %cst_88 = arith.constant 2.048000e+03 : f32
    %190 = arith.divf %189, %cst_88 : f32
    %191 = vector.broadcast %190 : f32 to vector<8x256xf32>
    %192 = arith.subf %185, %191 : vector<8x256xf32>
    %193 = arith.mulf %192, %192 : vector<8x256xf32>
    %194 = vector.shape_cast %193 : vector<8x256xf32> to vector<1x8x256xf32>
    %cst_89 = arith.constant dense<0.000000e+00> : vector<1xf32>
    %195 = vector.multi_reduction <add>, %194, %cst_89 [1, 2] : vector<1x8x256xf32> to vector<1xf32>
    %196 = vector.shape_cast %195 : vector<1xf32> to vector<1x1x1xf32>
    %197 = vector.extract %196[0, 0, 0] : f32 from vector<1x1x1xf32>
    %cst_90 = arith.constant 2.048000e+03 : f32
    %198 = arith.divf %197, %cst_90 : f32
    %cst_91 = arith.constant 9.99999974E-6 : f32
    %199 = arith.addf %198, %cst_91 : f32
    %200 = math.rsqrt %199 : f32
    %c0_92 = arith.constant 0 : index
    %c0_93 = arith.constant 0 : index
    %201 = vector.load %arg7[%c0_92, %c0_93] : memref<8x1xf32, #tpu.memory_space<vmem>>, vector<8x1xf32>
    %202 = vector.broadcast %200 : f32 to vector<8x1xf32>
    %203 = arith.mulf %202, %201 : vector<8x1xf32>
    %204 = vector.broadcast %203 : vector<8x1xf32> to vector<8x256xf32>
    %205 = arith.mulf %192, %204 : vector<8x256xf32>
    %c0_94 = arith.constant 0 : index
    %c0_95 = arith.constant 0 : index
    %206 = vector.load %arg8[%c0_94, %c0_95] : memref<8x1xf32, #tpu.memory_space<vmem>>, vector<8x1xf32>
    %207 = vector.broadcast %206 : vector<8x1xf32> to vector<8x256xf32>
    %208 = arith.addf %205, %207 : vector<8x256xf32>
    %c0_96 = arith.constant 0 : index
    %c0_97 = arith.constant 0 : index
    %c0_98 = arith.constant 0 : index
    %209 = vector.load %arg9[%c0_96, %c0_97, %c0_98] : memref<1x8x256xf32, #tpu.memory_space<vmem>>, vector<1x8x256xf32>
    %210 = vector.shape_cast %209 : vector<1x8x256xf32> to vector<8x256xf32>
    %211 = vector.shape_cast %208 : vector<8x256xf32> to vector<1x8x256xf32>
    tpu.vector_store %arg9[%c0_96, %c0_97, %c0_98], %211 {strides = array<i32>} : memref<1x8x256xf32, #tpu.memory_space<vmem>>, vector<1x8x256xf32>,
    return
  }
  func.func @transform_0(%arg0: i32) -> (i32, i32, i32) {
    %c0_i32 = arith.constant 0 : i32
    %c0_i32_0 = arith.constant 0 : i32
    %c0_i32_1 = arith.constant 0 : i32
    return %arg0, %c0_i32, %c0_i32_0 : i32, i32, i32
  }
  func.func @transform_1(%arg0: i32) -> (i32, i32) {
    %c0_i32 = arith.constant 0 : i32
    %c0_i32_0 = arith.constant 0 : i32
    %c0_i32_1 = arith.constant 0 : i32
    return %c0_i32, %c0_i32_0 : i32, i32
  }
  func.func @transform_2(%arg0: i32) -> (i32, i32, i32) {
    %c0_i32 = arith.constant 0 : i32
    %c0_i32_0 = arith.constant 0 : i32
    %c0_i32_1 = arith.constant 0 : i32
    %c0_i32_2 = arith.constant 0 : i32
    return %c0_i32, %c0_i32_0, %c0_i32_1 : i32, i32, i32
  }
  func.func @transform_3(%arg0: i32) -> (i32, i32) {
    %c0_i32 = arith.constant 0 : i32
    %c0_i32_0 = arith.constant 0 : i32
    %c0_i32_1 = arith.constant 0 : i32
    return %c0_i32, %c0_i32_0 : i32, i32
  }
  func.func @transform_4(%arg0: i32) -> (i32, i32) {
    %c0_i32 = arith.constant 0 : i32
    %c0_i32_0 = arith.constant 0 : i32
    %c0_i32_1 = arith.constant 0 : i32
    return %c0_i32, %c0_i32_0 : i32, i32
  }
  func.func @transform_5(%arg0: i32) -> (i32, i32, i32) {
    %c0_i32 = arith.constant 0 : i32
    %c0_i32_0 = arith.constant 0 : i32
    %c0_i32_1 = arith.constant 0 : i32
    %c0_i32_2 = arith.constant 0 : i32
    return %c0_i32, %c0_i32_0, %c0_i32_1 : i32, i32, i32
  }
  func.func @transform_6(%arg0: i32) -> (i32, i32) {
    %c0_i32 = arith.constant 0 : i32
    %c0_i32_0 = arith.constant 0 : i32
    %c0_i32_1 = arith.constant 0 : i32
    return %c0_i32, %c0_i32_0 : i32, i32
  }
  func.func @transform_7(%arg0: i32) -> (i32, i32) {
    %c0_i32 = arith.constant 0 : i32
    %c0_i32_0 = arith.constant 0 : i32
    %c0_i32_1 = arith.constant 0 : i32
    return %c0_i32, %c0_i32_0 : i32, i32
  }
  func.func @transform_8(%arg0: i32) -> (i32, i32, i32) {
    %c0_i32 = arith.constant 0 : i32
    %c0_i32_0 = arith.constant 0 : i32
    %c0_i32_1 = arith.constant 0 : i32
    return %arg0, %c0_i32, %c0_i32_0 : i32, i32, i32
  }
}

</mosaic_0001>

<llo_original>
// kernel: tpu_custom_call.1
$region0: #{tpu_custom_call.1}
  #allocation0 [shape = 'u32[]', space=smem, size = 0x4, offset = 0x4, fixed_abs, tag = 'smem constant byte address 0x4 - core index']
  #allocation1 [shape = 'u32[144,128]{1,0:T(1,128)}', space=vmem, size = 0x12000, scoped, tag = 'internal scratch']
  %s0 = inlined_call_operand.vmem [shape: f32[2,4,256], index: 0, kind: input, shape index: {}]
  %s1 = inlined_call_operand.vmem [shape: f32[9,256], index: 1, kind: input, shape index: {}]
  %s2 = inlined_call_operand.vmem [shape: bf16[9,8,4], index: 2, kind: input, shape index: {}]
  %s3 = inlined_call_operand.vmem [shape: f32[8,1], index: 3, kind: input, shape index: {}]
  %s4 = inlined_call_operand.vmem [shape: f32[8,1], index: 4, kind: input, shape index: {}]
  %s5 = inlined_call_operand.vmem [shape: bf16[9,8,8], index: 5, kind: input, shape index: {}]
  %s6 = inlined_call_operand.vmem [shape: f32[8,1], index: 6, kind: input, shape index: {}]
  %s7 = inlined_call_operand.vmem [shape: f32[8,1], index: 7, kind: input, shape index: {}]
  %s8 = inlined_call_operand.hbm [shape: f32[2,8,256], index: 8, kind: output, shape index: {}]
  %s9 = sld [smem:[#allocation0]]
  $region65: #{tpu_custom_call.1} parent=0
    _
  %s11 = ssub.s32 1, %s9
  %s12 = scalar_select 0, %s11, %s9
  $region1: #{tpu_custom_call.1} parent=0
    #allocation2 [shape = 'u8[16384]{0}', space=vmem, size = 0x4000, scoped, tag = 'output window, operand 0']
    #allocation3 [shape = 's32[2]{0}', space=sflag, size = 0x8, scoped, tag = 'scoped memory for tpu_custom_call.1']
    %13 = vsyncpa [#allocation3], 0
    %s14 = scalar_lea.sflag [#allocation3], 1
    %15 = vsyncpa %s14, 0
    loop: start=0, step=1, limit=4
    $region2: #{tpu_custom_call.1} parent=1 // loop_pre_header
      _
    $region3: #{tpu_custom_call.1} parent=1 // loop_header
      %s17 = sphi 0, %s21
      %p18 = scmp.ge.s32.totalorder %s17, 4
      %s27 = sphi 0, %s29
      %s30 = sphi 0, %s27
      %s31 = sphi 0, %s30
      %s47 = sphi 0, %s31
      %s51 = sphi 0, %s51
      %s53 = sphi 0, %s51
      %s54 = sphi 0, %s53
      %s68 = sphi 0, %s54
      %s72 = sphi 0, %s72
      %s74 = sphi 0, %s72
      %s75 = sphi 0, %s74
      %s89 = sphi 0, %s75
      %s93 = sphi 0, %s93
      %s95 = sphi 0, %s93
      %s96 = sphi 0, %s95
      %s110 = sphi 0, %s96
      %s114 = sphi 0, %s114
      %s116 = sphi 0, %s114
      %s117 = sphi 0, %s116
      %s131 = sphi 0, %s117
      %s135 = sphi 0, %s135
      %s137 = sphi 0, %s135
      %s138 = sphi 0, %s137
      %s152 = sphi 0, %s138
      %s156 = sphi 0, %s156
      %s158 = sphi 0, %s156
      %s159 = sphi 0, %s158
      %s173 = sphi 0, %s159
      %s177 = sphi 0, %s177
      %s179 = sphi 0, %s177
      %s180 = sphi 0, %s179
      %s194 = sphi 0, %s180
      %s200 = sphi 0, %s202
      %s203 = sphi 0, %s200
      %s204 = sphi 0, %s203
      %s220 = sphi 0, %s204
    $region4: #{tpu_custom_call.1} parent=1 // loop_header_branch
      %20 = sbr.rel (%p18) target = $region8
    $region5: #{tpu_custom_call.1} parent=1 // loop_body
      %s22 = ssub.s32 %s17, 1
      %s23 = ssub.s32 %s17, 2
      %s24 = sadd.s32 %s17, 1
      %s25 = ssub.s32 %s17, %s24
      %p26 = scmp.eq.s32.totalorder %s25, 0
      %s28 = sadd.s32 %s27, 1
      %s29 = scalar_select %p26, %s27, %s28
      %p32 = pneg %p26
      %p33 = scmp.eq.s32.totalorder %s17, 1
      %p34 = por %p32, %p33
      %p35 = scmp.ne.s32.totalorder %s27, %s30
      %p36 = scmp.eq.s32.totalorder %s17, 0
      %p37 = por %p35, %p36
      %p38 = scmp.ne.s32.totalorder %s27, %s30
      %p39 = scmp.eq.s32.totalorder %s22, 1
      %p40 = por %p38, %p39
      %p41 = scmp.ne.s32.totalorder %s30, %s31
      %p42 = scmp.eq.s32.totalorder %s22, 0
      %p43 = por %p41, %p42
      %p44 = scmp.ne.s32.totalorder %s30, %s31
      %p45 = scmp.eq.s32.totalorder %s23, 1
      %p46 = por %p44, %p45
      %p48 = scmp.ne.s32.totalorder %s31, %s47
      %p49 = scmp.eq.s32.totalorder %s23, 0
      %p50 = por %p48, %p49
      %s52 = sadd.s32 %s51, 1
      %p55 = scmp.eq.s32.totalorder %s17, 1
      %p56 = scmp.ne.s32.totalorder %s51, %s53
      %p57 = scmp.eq.s32.totalorder %s17, 0
      %p58 = por %p56, %p57
      %p59 = scmp.ne.s32.totalorder %s51, %s53
      %p60 = scmp.eq.s32.totalorder %s22, 1
      %p61 = por %p59, %p60
      %p62 = scmp.ne.s32.totalorder %s53, %s54
      %p63 = scmp.eq.s32.totalorder %s22, 0
      %p64 = por %p62, %p63
      %p65 = scmp.ne.s32.totalorder %s53, %s54
      %p66 = scmp.eq.s32.totalorder %s23, 1
      %p67 = por %p65, %p66
      %p69 = scmp.ne.s32.totalorder %s54, %s68
      %p70 = scmp.eq.s32.totalorder %s23, 0
      %p71 = por %p69, %p70
      %s73 = sadd.s32 %s72, 1
      %p76 = scmp.eq.s32.totalorder %s17, 1
      %p77 = scmp.ne.s32.totalorder %s72, %s74
      %p78 = scmp.eq.s32.totalorder %s17, 0
      %p79 = por %p77, %p78
      %p80 = scmp.ne.s32.totalorder %s72, %s74
      %p81 = scmp.eq.s32.totalorder %s22, 1
      %p82 = por %p80, %p81
      %p83 = scmp.ne.s32.totalorder %s74, %s75
      %p84 = scmp.eq.s32.totalorder %s22, 0
      %p85 = por %p83, %p84
      %p86 = scmp.ne.s32.totalorder %s74, %s75
      %p87 = scmp.eq.s32.totalorder %s23, 1
      %p88 = por %p86, %p87
      %p90 = scmp.ne.s32.totalorder %s75, %s89
      %p91 = scmp.eq.s32.totalorder %s23, 0
      %p92 = por %p90, %p91
      %s94 = sadd.s32 %s93, 1
      %p97 = scmp.eq.s32.totalorder %s17, 1
      %p98 = scmp.ne.s32.totalorder %s93, %s95
      %p99 = scmp.eq.s32.totalorder %s17, 0
      %p100 = por %p98, %p99
      %p101 = scmp.ne.s32.totalorder %s93, %s95
      %p102 = scmp.eq.s32.totalorder %s22, 1
      %p103 = por %p101, %p102
      %p104 = scmp.ne.s32.totalorder %s95, %s96
      %p105 = scmp.eq.s32.totalorder %s22, 0
      %p106 = por %p104, %p105
      %p107 = scmp.ne.s32.totalorder %s95, %s96
      %p108 = scmp.eq.s32.totalorder %s23, 1
      %p109 = por %p107, %p108
      %p111 = scmp.ne.s32.totalorder %s96, %s110
      %p112 = scmp.eq.s32.totalorder %s23, 0
      %p113 = por %p111, %p112
      %s115 = sadd.s32 %s114, 1
      %p118 = scmp.eq.s32.totalorder %s17, 1
      %p119 = scmp.ne.s32.totalorder %s114, %s116
      %p120 = scmp.eq.s32.totalorder %s17, 0
      %p121 = por %p119, %p120
      %p122 = scmp.ne.s32.totalorder %s114, %s116
      %p123 = scmp.eq.s32.totalorder %s22, 1
      %p124 = por %p122, %p123
      %p125 = scmp.ne.s32.totalorder %s116, %s117
      %p126 = scmp.eq.s32.totalorder %s22, 0
      %p127 = por %p125, %p126
      %p128 = scmp.ne.s32.totalorder %s116, %s117
      %p129 = scmp.eq.s32.totalorder %s23, 1
      %p130 = por %p128, %p129
      %p132 = scmp.ne.s32.totalorder %s117, %s131
      %p133 = scmp.eq.s32.totalorder %s23, 0
      %p134 = por %p132, %p133
      %s136 = sadd.s32 %s135, 1
      %p139 = scmp.eq.s32.totalorder %s17, 1
      %p140 = scmp.ne.s32.totalorder %s135, %s137
      %p141 = scmp.eq.s32.totalorder %s17, 0
      %p142 = por %p140, %p141
      %p143 = scmp.ne.s32.totalorder %s135, %s137
      %p144 = scmp.eq.s32.totalorder %s22, 1
      %p145 = por %p143, %p144
      %p146 = scmp.ne.s32.totalorder %s137, %s138
      %p147 = scmp.eq.s32.totalorder %s22, 0
      %p148 = por %p146, %p147
      %p149 = scmp.ne.s32.totalorder %s137, %s138
      %p150 = scmp.eq.s32.totalorder %s23, 1
      %p151 = por %p149, %p150
      %p153 = scmp.ne.s32.totalorder %s138, %s152
      %p154 = scmp.eq.s32.totalorder %s23, 0
      %p155 = por %p153, %p154
      %s157 = sadd.s32 %s156, 1
      %p160 = scmp.eq.s32.totalorder %s17, 1
      %p161 = scmp.ne.s32.totalorder %s156, %s158
      %p162 = scmp.eq.s32.totalorder %s17, 0
      %p163 = por %p161, %p162
      %p164 = scmp.ne.s32.totalorder %s156, %s158
      %p165 = scmp.eq.s32.totalorder %s22, 1
      %p166 = por %p164, %p165
      %p167 = scmp.ne.s32.totalorder %s158, %s159
      %p168 = scmp.eq.s32.totalorder %s22, 0
      %p169 = por %p167, %p168
      %p170 = scmp.ne.s32.totalorder %s158, %s159
      %p171 = scmp.eq.s32.totalorder %s23, 1
      %p172 = por %p170, %p171
      %p174 = scmp.ne.s32.totalorder %s159, %s173
      %p175 = scmp.eq.s32.totalorder %s23, 0
      %p176 = por %p174, %p175
      %s178 = sadd.s32 %s177, 1
      %p181 = scmp.eq.s32.totalorder %s17, 1
      %p182 = scmp.ne.s32.totalorder %s177, %s179
      %p183 = scmp.eq.s32.totalorder %s17, 0
      %p184 = por %p182, %p183
      %p185 = scmp.ne.s32.totalorder %s177, %s179
      %p186 = scmp.eq.s32.totalorder %s22, 1
      %p187 = por %p185, %p186
      %p188 = scmp.ne.s32.totalorder %s179, %s180
      %p189 = scmp.eq.s32.totalorder %s22, 0
      %p190 = por %p188, %p189
      %p191 = scmp.ne.s32.totalorder %s179, %s180
      %p192 = scmp.eq.s32.totalorder %s23, 1
      %p193 = por %p191, %p192
      %p195 = scmp.ne.s32.totalorder %s180, %s194
      %p196 = scmp.eq.s32.totalorder %s23, 0
      %p197 = por %p195, %p196
      %s198 = ssub.s32 %s17, %s24
      %p199 = scmp.eq.s32.totalorder %s198, 0
      %s201 = sadd.s32 %s200, 1
      %s202 = scalar_select %p199, %s200, %s201
      %p205 = pneg %p199
      %p206 = scmp.eq.s32.totalorder %s17, 1
      %p207 = por %p205, %p206
      %p208 = scmp.ne.s32.totalorder %s200, %s203
      %p209 = scmp.eq.s32.totalorder %s17, 0
      %p210 = por %p208, %p209
      %p211 = scmp.ne.s32.totalorder %s200, %s203
      %p212 = scmp.eq.s32.totalorder %s22, 1
      %p213 = por %p211, %p212
      %p214 = scmp.ne.s32.totalorder %s203, %s204
      %p215 = scmp.eq.s32.totalorder %s22, 0
      %p216 = por %p214, %p215
      %p217 = scmp.ne.s32.totalorder %s203, %s204
      %p218 = scmp.eq.s32.totalorder %s23, 1
      %p219 = por %p217, %p218
      %p221 = scmp.ne.s32.totalorder %s204, %s220
      %p222 = scmp.eq.s32.totalorder %s23, 0
      %p223 = por %p221, %p222
      %p224 = scmp.le.s32.totalorder 1, %s17
      %p225 = scmp.lt.s32.totalorder %s17, 3
      %p226 = pnand %p224, %p225
      %p227 = pneg %p226
      // Predicated region
      $region9: #{tpu_custom_call.1} parent=5 // pred_check
        _
      $region10: #{tpu_custom_call.1} parent=5 // pred_check_branch
        %229 = sbr.rel (%p226) target = $region12
      $region11: #{tpu_custom_call.1} parent=5 // pred_region
        %s230 = ssub.s32 %s17, 1
        // Predicated region
        $region13: #{tpu_custom_call.1} parent=11 // pred_check
          %p231 = pneg %p64
        $region14: #{tpu_custom_call.1} parent=11 // pred_check_branch
          %233 = sbr.rel (%p231) target = $region16
        $region15: #{tpu_custom_call.1} parent=11 // pred_region
          _
        $region16: #{tpu_custom_call.1} parent=11 // pred_fallthru
          _
        // Predicated region
        $region17: #{tpu_custom_call.1} parent=11 // pred_check
          %p234 = pneg %p85
        $region18: #{tpu_custom_call.1} parent=11 // pred_check_branch
          %236 = sbr.rel (%p234) target = $region20
        $region19: #{tpu_custom_call.1} parent=11 // pred_region
          _
        $region20: #{tpu_custom_call.1} parent=11 // pred_fallthru
          _
        // Predicated region
        $region21: #{tpu_custom_call.1} parent=11 // pred_check
          %p237 = pneg %p106
        $region22: #{tpu_custom_call.1} parent=11 // pred_check_branch
          %239 = sbr.rel (%p237) target = $region24
        $region23: #{tpu_custom_call.1} parent=11 // pred_region
          _
        $region24: #{tpu_custom_call.1} parent=11 // pred_fallthru
          _
        // Predicated region
        $region25: #{tpu_custom_call.1} parent=11 // pred_check
          %p240 = pneg %p127
        $region26: #{tpu_custom_call.1} parent=11 // pred_check_branch
          %242 = sbr.rel (%p240) target = $region28
        $region27: #{tpu_custom_call.1} parent=11 // pred_region
          _
        $region28: #{tpu_custom_call.1} parent=11 // pred_fallthru
          _
        // Predicated region
        $region29: #{tpu_custom_call.1} parent=11 // pred_check
          %p243 = pneg %p148
        $region30: #{tpu_custom_call.1} parent=11 // pred_check_branch
          %245 = sbr.rel (%p243) target = $region32
        $region31: #{tpu_custom_call.1} parent=11 // pred_region
          _
        $region32: #{tpu_custom_call.1} parent=11 // pred_fallthru
          _
        // Predicated region
        $region33: #{tpu_custom_call.1} parent=11 // pred_check
          %p246 = pneg %p169
        $region34: #{tpu_custom_call.1} parent=11 // pred_check_branch
          %248 = sbr.rel (%p246) target = $region36
        $region35: #{tpu_custom_call.1} parent=11 // pred_region
          _
        $region36: #{tpu_custom_call.1} parent=11 // pred_fallthru
          _
        // Predicated region
        $region37: #{tpu_custom_call.1} parent=11 // pred_check
          %p249 = pneg %p190
        $region38: #{tpu_custom_call.1} parent=11 // pred_check_branch
          %251 = sbr.rel (%p249) target = $region40
        $region39: #{tpu_custom_call.1} parent=11 // pred_region
          _
        $region40: #{tpu_custom_call.1} parent=11 // pred_fallthru
          _
      $region12: #{tpu_custom_call.1} parent=5 // pred_fallthru
        _
      %p252 = scmp.lt.s32.totalorder %s17, 2
      // Predicated region
      $region41: #{tpu_custom_call.1} parent=5 // pred_check
        %p253 = pneg %p252
      $region42: #{tpu_custom_call.1} parent=5 // pred_check_branch
        %255 = sbr.rel (%p253) target = $region44
      $region43: #{tpu_custom_call.1} parent=5 // pred_region
        // Predicated region
        $region45: #{tpu_custom_call.1} parent=43 // pred_check
          %p256 = pneg %p37
        $region46: #{tpu_custom_call.1} parent=43 // pred_check_branch
          %258 = sbr.rel (%p256) target = $region48
        $region47: #{tpu_custom_call.1} parent=43 // pred_region
          %p259 = scmp.lt.s32.totalorder %s17, 1
          %s260 = scalar_select %p259, %s17, 1
          %s261 = smul.addr %s260, 2
          %s262 = smul.addr %s261, 4
          %s263 = scalar_lea.vmem %s0, %s262
        $region48: #{tpu_custom_call.1} parent=43 // pred_fallthru
          _
      $region44: #{tpu_custom_call.1} parent=5 // pred_fallthru
        _
      %p264 = scmp.le.s32.totalorder 1, %s17
      %p265 = scmp.lt.s32.totalorder %s17, 3
      %p266 = pnand %p264, %p265
      %p267 = pneg %p266
      // Predicated region
      $region49: #{tpu_custom_call.1} parent=5 // pred_check
        _
      $region50: #{tpu_custom_call.1} parent=5 // pred_check_branch
        %269 = sbr.rel (%p266) target = $region52
      $region51: #{tpu_custom_call.1} parent=5 // pred_region
        %s270 = ssub.s32 %s17, 1
        %p271 = scmp.lt.s32.totalorder %s22, 1
        %s272 = scalar_select %p271, %s22, 1
        %s273 = smul.addr %s272, 2
        %s274 = smul.addr %s273, 4
        %s275 = scalar_lea.vmem %s0, %s274
        %p276 = pneg %p43
        %p277 = pneg %p40
        %p278 = pneg %p64
        %p279 = pneg %p61
        %p280 = pneg %p85
        %p281 = pneg %p82
        %p282 = pneg %p106
        %p283 = pneg %p103
        %p284 = pneg %p127
        %p285 = pneg %p124
        %p286 = pneg %p148
        %p287 = pneg %p145
        %p288 = pneg %p169
        %p289 = pneg %p166
        %p290 = pneg %p190
        %p291 = pneg %p187
        %p292 = pneg %p216
        %p293 = pneg %p213
        %s294 = sand.u32 %s203, 1
        %s295 = scalar_lea.sflag [#allocation3], %s294
        %s296 = sand.u32 %s203, 1
        %s297 = smul.addr %s296, 16
        %s298 = scalar_lea.vmem [#allocation2], %s297
        %p299 = scmp.lt.s32.totalorder %s22, 1
        %s300 = scalar_select %p299, %s22, 1
        %s301 = smul.addr %s300, 2
        %s302 = smul.addr %s301, 4
        %s303 = scalar_lea.vmem %s0, %s302
        %v305 = vld [vmem:[%s1] sm:$0xff]
        %v306 = vld [vmem:[%s1 + $0x8] sm:$0xff]
        %v307 = vld [vmem:[%s1 + $0x10] sm:$0x1]
        %v308 = vld [vmem:[%s1 + $0x18] sm:$0x1]
        %v309 = vld [vmem:[%s303] sm:$0xff]
        %v311 = vcombine.high %v309, %v309
        %313 = vrot.lane.b32.xlu0 %v309, 17
        %v314 = vpop.permute.xlu0 %313
        %315 = vrot.lane.b32.xlu0 %v311, 17
        %v316 = vpop.permute.xlu0 %315
        %v317 = vlaneseq
        %v318 = vand.u32 %v317, 127
        %vm319 = vcmp.lt.s32.totalorder %v318, 17
        %v320 = vsel %vm319, %v314, %v316
        %v321 = vsel %vm319, %v316, %v314
        %v322 = vlaneseq
        %v323 = vshrl.u32 %v322, 7
        %v324 = vsub.s32 0, %v323
        %v325 = vrot.slane %v305, %v324
        %v326 = vlaneseq
        %v327 = vshrl.u32 %v326, 7
        %v328 = vsub.s32 0, %v327
        %v329 = vrot.slane %v306, %v328
        %v330 = vmul.f32 %v321, %v325
        %v331 = vmul.f32 %v320, %v329
        %v332 = vpack.c.bf16 %v330, %v330
        %v333 = vpack.c.bf16 %v331, %v331
        %v334 = vld [vmem:[%s2] sm:$0xf]
        %335 = vrot.lane.b32.xlu0 %v309, 16
        %v336 = vpop.permute.xlu0 %335
        %337 = vrot.lane.b32.xlu0 %v311, 16
        %v338 = vpop.permute.xlu0 %337
        %vm339 = vcmp.lt.s32.totalorder %v318, 16
        %v340 = vsel %vm339, %v336, %v338
        %v341 = vsel %vm339, %v338, %v336
        %v342 = vlaneseq
        %v343 = vshrl.u32 %v342, 7
        %v344 = vsub.s32 1, %v343
        %v345 = vrot.slane %v305, %v344
        %v346 = vlaneseq
        %v347 = vshrl.u32 %v346, 7
        %v348 = vsub.s32 1, %v347
        %v349 = vrot.slane %v306, %v348
        %v350 = vmul.f32 %v341, %v345
        %v351 = vmul.f32 %v340, %v349
        %v352 = vpack.c.bf16 %v350, %v350
        %v353 = vpack.c.bf16 %v351, %v351
        %s354 = scalar_lea.vmem %s2, 4
        %v355 = vld [vmem:[%s354] sm:$0xf]
        %vm356 = vcmask 31744
        %v358 = vsel %vm356, %v355, 0
        %vm360 = vcmask 1041408
        %v362 = vsel %vm360, %v352, 0
        %v365 = vsel %vm360, %v353, 0
        %367 = vmatprep.subr.bf16.mxu0 %v365
        %368 = vmatpush1.bf16.msra.mxu0 %v362
        %369 = vmatprep.subr.bf16.mxu0 0
        %370 = vmatpush1.bf16.msra.mxu0 0
        %371 = vmatprep.subr.bf16.mxu0 0
        %372 = vmatpush1.bf16.msra.mxu0 0
        %373 = vmatprep.subr.bf16.mxu0 0
        %374 = vmatpush1.bf16.msra.mxu0 0
        %375 = vmatprep.subr.bf16.mxu0 0
        %376 = vmatpush1.bf16.msra.mxu0 0
        %377 = vmatprep.subr.bf16.mxu0 0
        %378 = vmatpush1.bf16.msra.mxu0 0
        %379 = vmatprep.subr.bf16.mxu0 0
        %380 = vmatpush1.bf16.msra.mxu0 0
        %381 = vmatprep.subr.bf16.mxu0 0
        %382 = vmatpush1.bf16.msra.mxu0 0
        %383 = vmatprep.subr.bf16.mxu0 0
        %384 = vmatpush1.bf16.msra.mxu0 0
        %385 = vmatprep.subr.bf16.mxu0 0
        %386 = vmatpush1.bf16.msra.mxu0 0
        %387 = vmatprep.subr.bf16.mxu0 0
        %388 = vmatpush1.bf16.msra.mxu0 0
        %389 = vmatprep.subr.bf16.mxu0 0
        %390 = vmatpush1.bf16.msra.mxu0 0
        %391 = vmatprep.subr.bf16.mxu0 0
        %392 = vmatpush1.bf16.msra.mxu0 0
        %393 = vmatprep.subr.bf16.mxu0 0
        %394 = vmatpush1.bf16.msra.mxu0 0
        %395 = vmatprep.subr.bf16.mxu0 0
        %396 = vmatpush1.bf16.msra.mxu0 0
        %397 = vmatprep.subr.bf16.mxu0 0
        %398 = vmatpush1.bf16.msra.mxu0 0
        %399 = vmatprep.mubr.bf16.mxu0 0
        %400 = vmatmul.mubr.bf16.gmra.mrb[0].mxu0 %v358
        %v401 = vpop.f32.mrb[0].mxu0
        %v402 = vadd.f32 0.0, %v401
        %v403 = vpop.f32.mrb[0].mxu0
        %v404 = vadd.f32 0.0, %v403
        %v405 = vpop.f32.mrb[0].mxu0
        %v406 = vpop.f32.mrb[0].mxu0
        %407 = vdwg.mxu0
        %v409 = vsel %vm356, %v334, 0
        %v412 = vsel %vm360, %v332, 0
        %v415 = vsel %vm360, %v333, 0
        %417 = vmatprep.subr.bf16.mxu0 %v415
        %418 = vmatpush1.bf16.msra.mxu0 %v412
        %419 = vmatprep.subr.bf16.mxu0 0
        %420 = vmatpush1.bf16.msra.mxu0 0
        %421 = vmatprep.subr.bf16.mxu0 0
        %422 = vmatpush1.bf16.msra.mxu0 0
        %423 = vmatprep.subr.bf16.mxu0 0
        %424 = vmatpush1.bf16.msra.mxu0 0
        %425 = vmatprep.subr.bf16.mxu0 0
        %426 = vmatpush1.bf16.msra.mxu0 0
        %427 = vmatprep.subr.bf16.mxu0 0
        %428 = vmatpush1.bf16.msra.mxu0 0
        %429 = vmatprep.subr.bf16.mxu0 0
        %430 = vmatpush1.bf16.msra.mxu0 0
        %431 = vmatprep.subr.bf16.mxu0 0
        %432 = vmatpush1.bf16.msra.mxu0 0
        %433 = vmatprep.subr.bf16.mxu0 0
        %434 = vmatpush1.bf16.msra.mxu0 0
        %435 = vmatprep.subr.bf16.mxu0 0
        %436 = vmatpush1.bf16.msra.mxu0 0
        %437 = vmatprep.subr.bf16.mxu0 0
        %438 = vmatpush1.bf16.msra.mxu0 0
        %439 = vmatprep.subr.bf16.mxu0 0
        %440 = vmatpush1.bf16.msra.mxu0 0
        %441 = vmatprep.subr.bf16.mxu0 0
        %442 = vmatpush1.bf16.msra.mxu0 0
        %443 = vmatprep.subr.bf16.mxu0 0
        %444 = vmatpush1.bf16.msra.mxu0 0
        %445 = vmatprep.subr.bf16.mxu0 0
        %446 = vmatpush1.bf16.msra.mxu0 0
        %447 = vmatprep.subr.bf16.mxu0 0
        %448 = vmatpush1.bf16.msra.mxu0 0
        %449 = vmatprep.mubr.bf16.mxu0 0
        %450 = vmatmul.mubr.bf16.gmra.mrb[0].mxu0 %v409
        %v451 = vpop.f32.mrb[0].mxu0
        %v452 = vadd.f32 %v402, %v451
        %v453 = vpop.f32.mrb[0].mxu0
        %v454 = vadd.f32 %v404, %v453
        %v455 = vpop.f32.mrb[0].mxu0
        %v456 = vpop.f32.mrb[0].mxu0
        %457 = vdwg.mxu0
        %458 = vrot.lane.b32.xlu0 %v309, 15
        %v459 = vpop.permute.xlu0 %458
        %460 = vrot.lane.b32.xlu0 %v311, 15
        %v461 = vpop.permute.xlu0 %460
        %vm462 = vcmp.lt.s32.totalorder %v318, 15
        %v463 = vsel %vm462, %v459, %v461
        %v464 = vsel %vm462, %v461, %v459
        %v465 = vlaneseq
        %v466 = vshrl.u32 %v465, 7
        %v467 = vsub.s32 2, %v466
        %v468 = vrot.slane %v305, %v467
        %v469 = vlaneseq
        %v470 = vshrl.u32 %v469, 7
        %v471 = vsub.s32 2, %v470
        %v472 = vrot.slane %v306, %v471
        %v473 = vmul.f32 %v464, %v468
        %v474 = vmul.f32 %v463, %v472
        %v475 = vpack.c.bf16 %v473, %v473
        %v476 = vpack.c.bf16 %v474, %v474
        %s477 = scalar_lea.vmem %s2, 8
        %v478 = vld [vmem:[%s477] sm:$0xf]
        %v480 = vsel %vm356, %v478, 0
        %v483 = vsel %vm360, %v475, 0
        %v486 = vsel %vm360, %v476, 0
        %488 = vmatprep.subr.bf16.mxu0 %v486
        %489 = vmatpush1.bf16.msra.mxu0 %v483
        %490 = vmatprep.subr.bf16.mxu0 0
        %491 = vmatpush1.bf16.msra.mxu0 0
        %492 = vmatprep.subr.bf16.mxu0 0
        %493 = vmatpush1.bf16.msra.mxu0 0
        %494 = vmatprep.subr.bf16.mxu0 0
        %495 = vmatpush1.bf16.msra.mxu0 0
        %496 = vmatprep.subr.bf16.mxu0 0
        %497 = vmatpush1.bf16.msra.mxu0 0
        %498 = vmatprep.subr.bf16.mxu0 0
        %499 = vmatpush1.bf16.msra.mxu0 0
        %500 = vmatprep.subr.bf16.mxu0 0
        %501 = vmatpush1.bf16.msra.mxu0 0
        %502 = vmatprep.subr.bf16.mxu0 0
        %503 = vmatpush1.bf16.msra.mxu0 0
        %504 = vmatprep.subr.bf16.mxu0 0
        %505 = vmatpush1.bf16.msra.mxu0 0
        %506 = vmatprep.subr.bf16.mxu0 0
        %507 = vmatpush1.bf16.msra.mxu0 0
        %508 = vmatprep.subr.bf16.mxu0 0
        %509 = vmatpush1.bf16.msra.mxu0 0
        %510 = vmatprep.subr.bf16.mxu0 0
        %511 = vmatpush1.bf16.msra.mxu0 0
        %512 = vmatprep.subr.bf16.mxu0 0
        %513 = vmatpush1.bf16.msra.mxu0 0
        %514 = vmatprep.subr.bf16.mxu0 0
        %515 = vmatpush1.bf16.msra.mxu0 0
        %516 = vmatprep.subr.bf16.mxu0 0
        %517 = vmatpush1.bf16.msra.mxu0 0
        %518 = vmatprep.subr.bf16.mxu0 0
        %519 = vmatpush1.bf16.msra.mxu0 0
        %520 = vmatprep.mubr.bf16.mxu0 0
        %521 = vmatmul.mubr.bf16.gmra.mrb[0].mxu0 %v480
        %v522 = vpop.f32.mrb[0].mxu0
        %v523 = vadd.f32 0.0, %v522
        %v524 = vpop.f32.mrb[0].mxu0
        %v525 = vadd.f32 0.0, %v524
        %v526 = vpop.f32.mrb[0].mxu0
        %v527 = vpop.f32.mrb[0].mxu0
        %528 = vdwg.mxu0
        %v529 = vadd.f32 %v452, %v523
        %v530 = vadd.f32 %v454, %v525
        %531 = vrot.lane.b32.xlu0 %v309, 1
        %v532 = vpop.permute.xlu0 %531
        %533 = vrot.lane.b32.xlu0 %v311, 1
        %v534 = vpop.permute.xlu0 %533
        %vm535 = vcmp.lt.s32.totalorder %v318, 1
        %v536 = vsel %vm535, %v532, %v534
        %v537 = vsel %vm535, %v534, %v532
        %v538 = vlaneseq
        %v539 = vshrl.u32 %v538, 7
        %v540 = vsub.s32 3, %v539
        %v541 = vrot.slane %v305, %v540
        %v542 = vlaneseq
        %v543 = vshrl.u32 %v542, 7
        %v544 = vsub.s32 3, %v543
        %v545 = vrot.slane %v306, %v544
        %v546 = vmul.f32 %v537, %v541
        %v547 = vmul.f32 %v536, %v545
        %v548 = vpack.c.bf16 %v546, %v546
        %v549 = vpack.c.bf16 %v547, %v547
        %s550 = scalar_lea.vmem %s2, 12
        %v551 = vld [vmem:[%s550] sm:$0xf]
        %v553 = vsel %vm356, %v551, 0
        %v556 = vsel %vm360, %v548, 0
        %v559 = vsel %vm360, %v549, 0
        %561 = vmatprep.subr.bf16.mxu0 %v559
        %562 = vmatpush1.bf16.msra.mxu0 %v556
        %563 = vmatprep.subr.bf16.mxu0 0
        %564 = vmatpush1.bf16.msra.mxu0 0
        %565 = vmatprep.subr.bf16.mxu0 0
        %566 = vmatpush1.bf16.msra.mxu0 0
        %567 = vmatprep.subr.bf16.mxu0 0
        %568 = vmatpush1.bf16.msra.mxu0 0
        %569 = vmatprep.subr.bf16.mxu0 0
        %570 = vmatpush1.bf16.msra.mxu0 0
        %571 = vmatprep.subr.bf16.mxu0 0
        %572 = vmatpush1.bf16.msra.mxu0 0
        %573 = vmatprep.subr.bf16.mxu0 0
        %574 = vmatpush1.bf16.msra.mxu0 0
        %575 = vmatprep.subr.bf16.mxu0 0
        %576 = vmatpush1.bf16.msra.mxu0 0
        %577 = vmatprep.subr.bf16.mxu0 0
        %578 = vmatpush1.bf16.msra.mxu0 0
        %579 = vmatprep.subr.bf16.mxu0 0
        %580 = vmatpush1.bf16.msra.mxu0 0
        %581 = vmatprep.subr.bf16.mxu0 0
        %582 = vmatpush1.bf16.msra.mxu0 0
        %583 = vmatprep.subr.bf16.mxu0 0
        %584 = vmatpush1.bf16.msra.mxu0 0
        %585 = vmatprep.subr.bf16.mxu0 0
        %586 = vmatpush1.bf16.msra.mxu0 0
        %587 = vmatprep.subr.bf16.mxu0 0
        %588 = vmatpush1.bf16.msra.mxu0 0
        %589 = vmatprep.subr.bf16.mxu0 0
        %590 = vmatpush1.bf16.msra.mxu0 0
        %591 = vmatprep.subr.bf16.mxu0 0
        %592 = vmatpush1.bf16.msra.mxu0 0
        %593 = vmatprep.mubr.bf16.mxu0 0
        %594 = vmatmul.mubr.bf16.gmra.mrb[0].mxu0 %v553
        %v595 = vpop.f32.mrb[0].mxu0
        %v596 = vadd.f32 0.0, %v595
        %v597 = vpop.f32.mrb[0].mxu0
        %v598 = vadd.f32 0.0, %v597
        %v599 = vpop.f32.mrb[0].mxu0
        %v600 = vpop.f32.mrb[0].mxu0
        %601 = vdwg.mxu0
        %v602 = vadd.f32 %v529, %v596
        %v603 = vadd.f32 %v530, %v598
        %v604 = vpack.c.bf16 %v309, %v309
        %v605 = vpack.c.bf16 %v311, %v311
        %s606 = scalar_lea.vmem %s2, 16
        %v607 = vld [vmem:[%s606] sm:$0xf]
        %v609 = vsel %vm356, %v607, 0
        %v612 = vsel %vm360, %v604, 0
        %v615 = vsel %vm360, %v605, 0
        %617 = vmatprep.subr.bf16.mxu0 %v615
        %618 = vmatpush1.bf16.msra.mxu0 %v612
        %619 = vmatprep.subr.bf16.mxu0 0
        %620 = vmatpush1.bf16.msra.mxu0 0
        %621 = vmatprep.subr.bf16.mxu0 0
        %622 = vmatpush1.bf16.msra.mxu0 0
        %623 = vmatprep.subr.bf16.mxu0 0
        %624 = vmatpush1.bf16.msra.mxu0 0
        %625 = vmatprep.subr.bf16.mxu0 0
        %626 = vmatpush1.bf16.msra.mxu0 0
        %627 = vmatprep.subr.bf16.mxu0 0
        %628 = vmatpush1.bf16.msra.mxu0 0
        %629 = vmatprep.subr.bf16.mxu0 0
        %630 = vmatpush1.bf16.msra.mxu0 0
        %631 = vmatprep.subr.bf16.mxu0 0
        %632 = vmatpush1.bf16.msra.mxu0 0
        %633 = vmatprep.subr.bf16.mxu0 0
        %634 = vmatpush1.bf16.msra.mxu0 0
        %635 = vmatprep.subr.bf16.mxu0 0
        %636 = vmatpush1.bf16.msra.mxu0 0
        %637 = vmatprep.subr.bf16.mxu0 0
        %638 = vmatpush1.bf16.msra.mxu0 0
        %639 = vmatprep.subr.bf16.mxu0 0
        %640 = vmatpush1.bf16.msra.mxu0 0
        %641 = vmatprep.subr.bf16.mxu0 0
        %642 = vmatpush1.bf16.msra.mxu0 0
        %643 = vmatprep.subr.bf16.mxu0 0
        %644 = vmatpush1.bf16.msra.mxu0 0
        %645 = vmatprep.subr.bf16.mxu0 0
        %646 = vmatpush1.bf16.msra.mxu0 0
        %647 = vmatprep.subr.bf16.mxu0 0
        %648 = vmatpush1.bf16.msra.mxu0 0
        %649 = vmatprep.mubr.bf16.mxu0 0
        %650 = vmatmul.mubr.bf16.gmra.mrb[0].mxu0 %v609
        %v651 = vpop.f32.mrb[0].mxu0
        %v652 = vadd.f32 0.0, %v651
        %v653 = vpop.f32.mrb[0].mxu0
        %v654 = vadd.f32 0.0, %v653
        %v655 = vpop.f32.mrb[0].mxu0
        %v656 = vpop.f32.mrb[0].mxu0
        %657 = vdwg.mxu0
        %v658 = vadd.f32 %v602, %v652
        %v659 = vadd.f32 %v603, %v654
        %660 = vrot.lane.b32.xlu0 %v309, 127
        %v661 = vpop.permute.xlu0 %660
        %662 = vrot.lane.b32.xlu0 %v311, 127
        %v663 = vpop.permute.xlu0 %662
        %vm664 = vcmp.lt.s32.totalorder %v318, 127
        %v665 = vsel %vm664, %v661, %v663
        %v666 = vsel %vm664, %v663, %v661
        %v667 = vlaneseq
        %v668 = vshrl.u32 %v667, 7
        %v669 = vsub.s32 5, %v668
        %v670 = vrot.slane %v305, %v669
        %v671 = vlaneseq
        %v672 = vshrl.u32 %v671, 7
        %v673 = vsub.s32 5, %v672
        %v674 = vrot.slane %v306, %v673
        %v675 = vmul.f32 %v665, %v670
        %v676 = vmul.f32 %v666, %v674
        %v677 = vpack.c.bf16 %v675, %v675
        %v678 = vpack.c.bf16 %v676, %v676
        %s679 = scalar_lea.vmem %s2, 20
        %v680 = vld [vmem:[%s679] sm:$0xf]
        %v682 = vsel %vm356, %v680, 0
        %v685 = vsel %vm360, %v677, 0
        %v688 = vsel %vm360, %v678, 0
        %690 = vmatprep.subr.bf16.mxu0 %v688
        %691 = vmatpush1.bf16.msra.mxu0 %v685
        %692 = vmatprep.subr.bf16.mxu0 0
        %693 = vmatpush1.bf16.msra.mxu0 0
        %694 = vmatprep.subr.bf16.mxu0 0
        %695 = vmatpush1.bf16.msra.mxu0 0
        %696 = vmatprep.subr.bf16.mxu0 0
        %697 = vmatpush1.bf16.msra.mxu0 0
        %698 = vmatprep.subr.bf16.mxu0 0
        %699 = vmatpush1.bf16.msra.mxu0 0
        %700 = vmatprep.subr.bf16.mxu0 0
        %701 = vmatpush1.bf16.msra.mxu0 0
        %702 = vmatprep.subr.bf16.mxu0 0
        %703 = vmatpush1.bf16.msra.mxu0 0
        %704 = vmatprep.subr.bf16.mxu0 0
        %705 = vmatpush1.bf16.msra.mxu0 0
        %706 = vmatprep.subr.bf16.mxu0 0
        %707 = vmatpush1.bf16.msra.mxu0 0
        %708 = vmatprep.subr.bf16.mxu0 0
        %709 = vmatpush1.bf16.msra.mxu0 0
        %710 = vmatprep.subr.bf16.mxu0 0
        %711 = vmatpush1.bf16.msra.mxu0 0
        %712 = vmatprep.subr.bf16.mxu0 0
        %713 = vmatpush1.bf16.msra.mxu0 0
        %714 = vmatprep.subr.bf16.mxu0 0
        %715 = vmatpush1.bf16.msra.mxu0 0
        %716 = vmatprep.subr.bf16.mxu0 0
        %717 = vmatpush1.bf16.msra.mxu0 0
        %718 = vmatprep.subr.bf16.mxu0 0
        %719 = vmatpush1.bf16.msra.mxu0 0
        %720 = vmatprep.subr.bf16.mxu0 0
        %721 = vmatpush1.bf16.msra.mxu0 0
        %722 = vmatprep.mubr.bf16.mxu0 0
        %723 = vmatmul.mubr.bf16.gmra.mrb[0].mxu0 %v682
        %v724 = vpop.f32.mrb[0].mxu0
        %v725 = vadd.f32 0.0, %v724
        %v726 = vpop.f32.mrb[0].mxu0
        %v727 = vadd.f32 0.0, %v726
        %v728 = vpop.f32.mrb[0].mxu0
        %v729 = vpop.f32.mrb[0].mxu0
        %730 = vdwg.mxu0
        %v731 = vadd.f32 %v658, %v725
        %v732 = vadd.f32 %v659, %v727
        %733 = vrot.lane.b32.xlu0 %v309, 113
        %v734 = vpop.permute.xlu0 %733
        %735 = vrot.lane.b32.xlu0 %v311, 113
        %v736 = vpop.permute.xlu0 %735
        %vm737 = vcmp.lt.s32.totalorder %v318, 113
        %v738 = vsel %vm737, %v734, %v736
        %v739 = vsel %vm737, %v736, %v734
        %v740 = vlaneseq
        %v741 = vshrl.u32 %v740, 7
        %v742 = vsub.s32 6, %v741
        %v743 = vrot.slane %v305, %v742
        %v744 = vlaneseq
        %v745 = vshrl.u32 %v744, 7
        %v746 = vsub.s32 6, %v745
        %v747 = vrot.slane %v306, %v746
        %v748 = vmul.f32 %v738, %v743
        %v749 = vmul.f32 %v739, %v747
        %v750 = vpack.c.bf16 %v748, %v748
        %v751 = vpack.c.bf16 %v749, %v749
        %s752 = scalar_lea.vmem %s2, 24
        %v753 = vld [vmem:[%s752] sm:$0xf]
        %v755 = vsel %vm356, %v753, 0
        %v758 = vsel %vm360, %v750, 0
        %v761 = vsel %vm360, %v751, 0
        %763 = vmatprep.subr.bf16.mxu0 %v761
        %764 = vmatpush1.bf16.msra.mxu0 %v758
        %765 = vmatprep.subr.bf16.mxu0 0
        %766 = vmatpush1.bf16.msra.mxu0 0
        %767 = vmatprep.subr.bf16.mxu0 0
        %768 = vmatpush1.bf16.msra.mxu0 0
        %769 = vmatprep.subr.bf16.mxu0 0
        %770 = vmatpush1.bf16.msra.mxu0 0
        %771 = vmatprep.subr.bf16.mxu0 0
        %772 = vmatpush1.bf16.msra.mxu0 0
        %773 = vmatprep.subr.bf16.mxu0 0
        %774 = vmatpush1.bf16.msra.mxu0 0
        %775 = vmatprep.subr.bf16.mxu0 0
        %776 = vmatpush1.bf16.msra.mxu0 0
        %777 = vmatprep.subr.bf16.mxu0 0
        %778 = vmatpush1.bf16.msra.mxu0 0
        %779 = vmatprep.subr.bf16.mxu0 0
        %780 = vmatpush1.bf16.msra.mxu0 0
        %781 = vmatprep.subr.bf16.mxu0 0
        %782 = vmatpush1.bf16.msra.mxu0 0
        %783 = vmatprep.subr.bf16.mxu0 0
        %784 = vmatpush1.bf16.msra.mxu0 0
        %785 = vmatprep.subr.bf16.mxu0 0
        %786 = vmatpush1.bf16.msra.mxu0 0
        %787 = vmatprep.subr.bf16.mxu0 0
        %788 = vmatpush1.bf16.msra.mxu0 0
        %789 = vmatprep.subr.bf16.mxu0 0
        %790 = vmatpush1.bf16.msra.mxu0 0
        %791 = vmatprep.subr.bf16.mxu0 0
        %792 = vmatpush1.bf16.msra.mxu0 0
        %793 = vmatprep.subr.bf16.mxu0 0
        %794 = vmatpush1.bf16.msra.mxu0 0
        %795 = vmatprep.mubr.bf16.mxu0 0
        %796 = vmatmul.mubr.bf16.gmra.mrb[0].mxu0 %v755
        %v797 = vpop.f32.mrb[0].mxu0
        %v798 = vadd.f32 0.0, %v797
        %v799 = vpop.f32.mrb[0].mxu0
        %v800 = vadd.f32 0.0, %v799
        %v801 = vpop.f32.mrb[0].mxu0
        %v802 = vpop.f32.mrb[0].mxu0
        %803 = vdwg.mxu0
        %v804 = vadd.f32 %v731, %v798
        %v805 = vadd.f32 %v732, %v800
        %806 = vrot.lane.b32.xlu0 %v309, 112
        %v807 = vpop.permute.xlu0 %806
        %808 = vrot.lane.b32.xlu0 %v311, 112
        %v809 = vpop.permute.xlu0 %808
        %vm810 = vcmp.lt.s32.totalorder %v318, 112
        %v811 = vsel %vm810, %v807, %v809
        %v812 = vsel %vm810, %v809, %v807
        %v813 = vlaneseq
        %v814 = vshrl.u32 %v813, 7
        %v815 = vsub.s32 7, %v814
        %v816 = vrot.slane %v305, %v815
        %v817 = vlaneseq
        %v818 = vshrl.u32 %v817, 7
        %v819 = vsub.s32 7, %v818
        %v820 = vrot.slane %v306, %v819
        %v821 = vmul.f32 %v811, %v816
        %v822 = vmul.f32 %v812, %v820
        %v823 = vpack.c.bf16 %v821, %v821
        %v824 = vpack.c.bf16 %v822, %v822
        %s825 = scalar_lea.vmem %s2, 28
        %v826 = vld [vmem:[%s825] sm:$0xf]
        %v828 = vsel %vm356, %v826, 0
        %v831 = vsel %vm360, %v823, 0
        %v834 = vsel %vm360, %v824, 0
        %836 = vmatprep.subr.bf16.mxu0 %v834
        %837 = vmatpush1.bf16.msra.mxu0 %v831
        %838 = vmatprep.subr.bf16.mxu0 0
        %839 = vmatpush1.bf16.msra.mxu0 0
        %840 = vmatprep.subr.bf16.mxu0 0
        %841 = vmatpush1.bf16.msra.mxu0 0
        %842 = vmatprep.subr.bf16.mxu0 0
        %843 = vmatpush1.bf16.msra.mxu0 0
        %844 = vmatprep.subr.bf16.mxu0 0
        %845 = vmatpush1.bf16.msra.mxu0 0
        %846 = vmatprep.subr.bf16.mxu0 0
        %847 = vmatpush1.bf16.msra.mxu0 0
        %848 = vmatprep.subr.bf16.mxu0 0
        %849 = vmatpush1.bf16.msra.mxu0 0
        %850 = vmatprep.subr.bf16.mxu0 0
        %851 = vmatpush1.bf16.msra.mxu0 0
        %852 = vmatprep.subr.bf16.mxu0 0
        %853 = vmatpush1.bf16.msra.mxu0 0
        %854 = vmatprep.subr.bf16.mxu0 0
        %855 = vmatpush1.bf16.msra.mxu0 0
        %856 = vmatprep.subr.bf16.mxu0 0
        %857 = vmatpush1.bf16.msra.mxu0 0
        %858 = vmatprep.subr.bf16.mxu0 0
        %859 = vmatpush1.bf16.msra.mxu0 0
        %860 = vmatprep.subr.bf16.mxu0 0
        %861 = vmatpush1.bf16.msra.mxu0 0
        %862 = vmatprep.subr.bf16.mxu0 0
        %863 = vmatpush1.bf16.msra.mxu0 0
        %864 = vmatprep.subr.bf16.mxu0 0
        %865 = vmatpush1.bf16.msra.mxu0 0
        %866 = vmatprep.subr.bf16.mxu0 0
        %867 = vmatpush1.bf16.msra.mxu0 0
        %868 = vmatprep.mubr.bf16.mxu0 0
        %869 = vmatmul.mubr.bf16.gmra.mrb[0].mxu0 %v828
        %v870 = vpop.f32.mrb[0].mxu0
        %v871 = vadd.f32 0.0, %v870
        %v872 = vpop.f32.mrb[0].mxu0
        %v873 = vadd.f32 0.0, %v872
        %v874 = vpop.f32.mrb[0].mxu0
        %v875 = vpop.f32.mrb[0].mxu0
        %876 = vdwg.mxu0
        %v877 = vadd.f32 %v804, %v871
        %v878 = vadd.f32 %v805, %v873
        %879 = vrot.lane.b32.xlu0 %v309, 111
        %v880 = vpop.permute.xlu0 %879
        %881 = vrot.lane.b32.xlu0 %v311, 111
        %v882 = vpop.permute.xlu0 %881
        %vm883 = vcmp.lt.s32.totalorder %v318, 111
        %v884 = vsel %vm883, %v880, %v882
        %v885 = vsel %vm883, %v882, %v880
        %v886 = vlaneseq
        %v887 = vshrl.u32 %v886, 7
        %v888 = vsub.s32 0, %v887
        %v889 = vrot.slane %v307, %v888
        %v890 = vlaneseq
        %v891 = vshrl.u32 %v890, 7
        %v892 = vsub.s32 0, %v891
        %v893 = vrot.slane %v308, %v892
        %v894 = vmul.f32 %v884, %v889
        %v895 = vmul.f32 %v885, %v893
        %v896 = vpack.c.bf16 %v894, %v894
        %v897 = vpack.c.bf16 %v895, %v895
        %s898 = scalar_lea.vmem %s2, 32
        %v899 = vld [vmem:[%s898] sm:$0xf]
        %v901 = vsel %vm356, %v899, 0
        %v904 = vsel %vm360, %v896, 0
        %v907 = vsel %vm360, %v897, 0
        %909 = vmatprep.subr.bf16.mxu0 %v907
        %910 = vmatpush1.bf16.msra.mxu0 %v904
        %911 = vmatprep.subr.bf16.mxu0 0
        %912 = vmatpush1.bf16.msra.mxu0 0
        %913 = vmatprep.subr.bf16.mxu0 0
        %914 = vmatpush1.bf16.msra.mxu0 0
        %915 = vmatprep.subr.bf16.mxu0 0
        %916 = vmatpush1.bf16.msra.mxu0 0
        %917 = vmatprep.subr.bf16.mxu0 0
        %918 = vmatpush1.bf16.msra.mxu0 0
        %919 = vmatprep.subr.bf16.mxu0 0
        %920 = vmatpush1.bf16.msra.mxu0 0
        %921 = vmatprep.subr.bf16.mxu0 0
        %922 = vmatpush1.bf16.msra.mxu0 0
        %923 = vmatprep.subr.bf16.mxu0 0
        %924 = vmatpush1.bf16.msra.mxu0 0
        %925 = vmatprep.subr.bf16.mxu0 0
        %926 = vmatpush1.bf16.msra.mxu0 0
        %927 = vmatprep.subr.bf16.mxu0 0
        %928 = vmatpush1.bf16.msra.mxu0 0
        %929 = vmatprep.subr.bf16.mxu0 0
        %930 = vmatpush1.bf16.msra.mxu0 0
        %931 = vmatprep.subr.bf16.mxu0 0
        %932 = vmatpush1.bf16.msra.mxu0 0
        %933 = vmatprep.subr.bf16.mxu0 0
        %934 = vmatpush1.bf16.msra.mxu0 0
        %935 = vmatprep.subr.bf16.mxu0 0
        %936 = vmatpush1.bf16.msra.mxu0 0
        %937 = vmatprep.subr.bf16.mxu0 0
        %938 = vmatpush1.bf16.msra.mxu0 0
        %939 = vmatprep.subr.bf16.mxu0 0
        %940 = vmatpush1.bf16.msra.mxu0 0
        %941 = vmatprep.mubr.bf16.mxu0 0
        %942 = vmatmul.mubr.bf16.gmra.mrb[0].mxu0 %v901
        %v943 = vpop.f32.mrb[0].mxu0
        %v944 = vadd.f32 0.0, %v943
        %v945 = vpop.f32.mrb[0].mxu0
        %v946 = vadd.f32 0.0, %v945
        %v947 = vpop.f32.mrb[0].mxu0
        %v948 = vpop.f32.mrb[0].mxu0
        %949 = vdwg.mxu0
        %v950 = vadd.f32 %v877, %v944
        %v951 = vadd.f32 %v878, %v946
        %v952 = vadd.f32 %v950, %v951
        %953 = vadd.xlane.f32.xlu0 %v952
        %v954 = vpop.xlane.xlu0 %953
        %v955 = vrot.slane %v954, 4
        %v956 = vadd.f32 %v954, %v955
        %v957 = vrot.slane %v956, 2
        %v958 = vadd.f32 %v956, %v957
        %v959 = vrot.slane %v958, 1
        %v960 = vadd.f32 %v958, %v959
        %s961 = vtos %v960
        %v962 = vrcp.pop 2048.0
        %s963 = vtos %v962
        %s964 = smul.f32 %s961, %s963
        %v965 = vstv %s964
        %v966 = vsub.f32 %v950, %v965
        %v967 = vsub.f32 %v951, %v965
        %v968 = vmul.f32 %v966, %v966
        %v969 = vmul.f32 %v967, %v967
        %v970 = vadd.f32 %v968, %v969
        %971 = vadd.xlane.f32.xlu0 %v970
        %v972 = vpop.xlane.xlu0 %971
        %v973 = vrot.slane %v972, 4
        %v974 = vadd.f32 %v972, %v973
        %v975 = vrot.slane %v974, 2
        %v976 = vadd.f32 %v974, %v975
        %v977 = vrot.slane %v976, 1
        %v978 = vadd.f32 %v976, %v977
        %s979 = vtos %v978
        %v980 = vrcp.pop 2048.0
        %s981 = vtos %v980
        %s982 = smul.f32 %s979, %s981
        %s983 = sadd.f32 %s982, 1e-05
        %v984 = vstv %s983
        %v985 = vrsqrt.pop %v984
        %s986 = vtos %v985
        %v987 = vld [vmem:[%s3] sm:$0xff]
        %v988 = vstv %s986
        %v989 = vmul.f32 %v988, %v987
        %991 = vset.pattern.permute.xlu0 0
        %992 = vperm.xlu0 %991, %v989
        %v993 = vpop.permute.xlu0 %992
        %v995 = vmul.f32 %v966, %v993
        %v996 = vmul.f32 %v967, %v993
        %v997 = vld [vmem:[%s4] sm:$0xff]
        %999 = vset.pattern.permute.xlu0 0
        %1000 = vperm.xlu0 %999, %v997
        %v1001 = vpop.permute.xlu0 %1000
        %v1003 = vadd.f32 %v995, %v1001
        %v1004 = vadd.f32 %v996, %v1001
        %v1005 = vmul.f32 %v1003, 0.5
        %v1006 = vmul.f32 %v1004, 0.5
        %v1007 = vmul.f32 %v1003, 0.70710677
        %v1008 = vmul.f32 %v1004, 0.70710677
        %v1009 = verf.f32.pop %v1007
        %v1010 = verf.f32.pop %v1008
        %v1011 = vadd.f32 %v1009, 1.0
        %v1012 = vadd.f32 %v1010, 1.0
        %v1013 = vmul.f32 %v1005, %v1011
        %v1014 = vmul.f32 %v1006, %v1012
        %1015 = vrot.lane.b32.xlu0 %v1013, 17
        %v1016 = vpop.permute.xlu0 %1015
        %1017 = vrot.lane.b32.xlu0 %v1014, 17
        %v1018 = vpop.permute.xlu0 %1017
        %v1019 = vsel %vm319, %v1016, %v1018
        %v1020 = vsel %vm319, %v1018, %v1016
        %v1021 = vmul.f32 %v1020, %v325
        %v1022 = vmul.f32 %v1019, %v329
        %v1023 = vpack.c.bf16 %v1021, %v1021
        %v1024 = vpack.c.bf16 %v1022, %v1022
        %v1025 = vld [vmem:[%s5] sm:$0xf]
        %1026 = vrot.lane.b32.xlu0 %v1013, 16
        %v1027 = vpop.permute.xlu0 %1026
        %1028 = vrot.lane.b32.xlu0 %v1014, 16
        %v1029 = vpop.permute.xlu0 %1028
        %v1030 = vsel %vm339, %v1027, %v1029
        %v1031 = vsel %vm339, %v1029, %v1027
        %v1032 = vmul.f32 %v1031, %v345
        %v1033 = vmul.f32 %v1030, %v349
        %v1034 = vpack.c.bf16 %v1032, %v1032
        %v1035 = vpack.c.bf16 %v1033, %v1033
        %s1036 = scalar_lea.vmem %s5, 4
        %v1037 = vld [vmem:[%s1036] sm:$0xf]
        %vm1038 = vcmask 64512
        %v1040 = vsel %vm1038, %v1037, 0
        %vm1042 = vcmask 1043456
        %v1044 = vsel %vm1042, %v1034, 0
        %v1047 = vsel %vm1042, %v1035, 0
        %1049 = vmatprep.subr.bf16.mxu0 %v1047
        %1050 = vmatpush1.bf16.msra.mxu0 %v1044
        %1051 = vmatprep.subr.bf16.mxu0 0
        %1052 = vmatpush1.bf16.msra.mxu0 0
        %1053 = vmatprep.subr.bf16.mxu0 0
        %1054 = vmatpush1.bf16.msra.mxu0 0
        %1055 = vmatprep.subr.bf16.mxu0 0
        %1056 = vmatpush1.bf16.msra.mxu0 0
        %1057 = vmatprep.subr.bf16.mxu0 0
        %1058 = vmatpush1.bf16.msra.mxu0 0
        %1059 = vmatprep.subr.bf16.mxu0 0
        %1060 = vmatpush1.bf16.msra.mxu0 0
        %1061 = vmatprep.subr.bf16.mxu0 0
        %1062 = vmatpush1.bf16.msra.mxu0 0
        %1063 = vmatprep.subr.bf16.mxu0 0
        %1064 = vmatpush1.bf16.msra.mxu0 0
        %1065 = vmatprep.subr.bf16.mxu0 0
        %1066 = vmatpush1.bf16.msra.mxu0 0
        %1067 = vmatprep.subr.bf16.mxu0 0
        %1068 = vmatpush1.bf16.msra.mxu0 0
        %1069 = vmatprep.subr.bf16.mxu0 0
        %1070 = vmatpush1.bf16.msra.mxu0 0
        %1071 = vmatprep.subr.bf16.mxu0 0
        %1072 = vmatpush1.bf16.msra.mxu0 0
        %1073 = vmatprep.subr.bf16.mxu0 0
        %1074 = vmatpush1.bf16.msra.mxu0 0
        %1075 = vmatprep.subr.bf16.mxu0 0
        %1076 = vmatpush1.bf16.msra.mxu0 0
        %1077 = vmatprep.subr.bf16.mxu0 0
        %1078 = vmatpush1.bf16.msra.mxu0 0
        %1079 = vmatprep.subr.bf16.mxu0 0
        %1080 = vmatpush1.bf16.msra.mxu0 0
        %1081 = vmatprep.mubr.bf16.mxu0 0
        %1082 = vmatmul.mubr.bf16.gmra.mrb[0].mxu0 %v1040
        %v1083 = vpop.f32.mrb[0].mxu0
        %v1084 = vadd.f32 0.0, %v1083
        %v1085 = vpop.f32.mrb[0].mxu0
        %v1086 = vadd.f32 0.0, %v1085
        %v1087 = vpop.f32.mrb[0].mxu0
        %v1088 = vpop.f32.mrb[0].mxu0
        %1089 = vdwg.mxu0
        %v1091 = vsel %vm1038, %v1025, 0
        %v1094 = vsel %vm1042, %v1023, 0
        %v1097 = vsel %vm1042, %v1024, 0
        %1099 = vmatprep.subr.bf16.mxu0 %v1097
        %1100 = vmatpush1.bf16.msra.mxu0 %v1094
        %1101 = vmatprep.subr.bf16.mxu0 0
        %1102 = vmatpush1.bf16.msra.mxu0 0
        %1103 = vmatprep.subr.bf16.mxu0 0
        %1104 = vmatpush1.bf16.msra.mxu0 0
        %1105 = vmatprep.subr.bf16.mxu0 0
        %1106 = vmatpush1.bf16.msra.mxu0 0
        %1107 = vmatprep.subr.bf16.mxu0 0
        %1108 = vmatpush1.bf16.msra.mxu0 0
        %1109 = vmatprep.subr.bf16.mxu0 0
        %1110 = vmatpush1.bf16.msra.mxu0 0
        %1111 = vmatprep.subr.bf16.mxu0 0
        %1112 = vmatpush1.bf16.msra.mxu0 0
        %1113 = vmatprep.subr.bf16.mxu0 0
        %1114 = vmatpush1.bf16.msra.mxu0 0
        %1115 = vmatprep.subr.bf16.mxu0 0
        %1116 = vmatpush1.bf16.msra.mxu0 0
        %1117 = vmatprep.subr.bf16.mxu0 0
        %1118 = vmatpush1.bf16.msra.mxu0 0
        %1119 = vmatprep.subr.bf16.mxu0 0
        %1120 = vmatpush1.bf16.msra.mxu0 0
        %1121 = vmatprep.subr.bf16.mxu0 0
        %1122 = vmatpush1.bf16.msra.mxu0 0
        %1123 = vmatprep.subr.bf16.mxu0 0
        %1124 = vmatpush1.bf16.msra.mxu0 0
        %1125 = vmatprep.subr.bf16.mxu0 0
        %1126 = vmatpush1.bf16.msra.mxu0 0
        %1127 = vmatprep.subr.bf16.mxu0 0
        %1128 = vmatpush1.bf16.msra.mxu0 0
        %1129 = vmatprep.subr.bf16.mxu0 0
        %1130 = vmatpush1.bf16.msra.mxu0 0
        %1131 = vmatprep.mubr.bf16.mxu0 0
        %1132 = vmatmul.mubr.bf16.gmra.mrb[0].mxu0 %v1091
        %v1133 = vpop.f32.mrb[0].mxu0
        %v1134 = vadd.f32 %v1084, %v1133
        %v1135 = vpop.f32.mrb[0].mxu0
        %v1136 = vadd.f32 %v1086, %v1135
        %v1137 = vpop.f32.mrb[0].mxu0
        %v1138 = vpop.f32.mrb[0].mxu0
        %1139 = vdwg.mxu0
        %1140 = vrot.lane.b32.xlu0 %v1013, 15
        %v1141 = vpop.permute.xlu0 %1140
        %1142 = vrot.lane.b32.xlu0 %v1014, 15
        %v1143 = vpop.permute.xlu0 %1142
        %v1144 = vsel %vm462, %v1141, %v1143
        %v1145 = vsel %vm462, %v1143, %v1141
        %v1146 = vmul.f32 %v1145, %v468
        %v1147 = vmul.f32 %v1144, %v472
        %v1148 = vpack.c.bf16 %v1146, %v1146
        %v1149 = vpack.c.bf16 %v1147, %v1147
        %s1150 = scalar_lea.vmem %s5, 8
        %v1151 = vld [vmem:[%s1150] sm:$0xf]
        %v1153 = vsel %vm1038, %v1151, 0
        %v1156 = vsel %vm1042, %v1148, 0
        %v1159 = vsel %vm1042, %v1149, 0
        %1161 = vmatprep.subr.bf16.mxu0 %v1159
        %1162 = vmatpush1.bf16.msra.mxu0 %v1156
        %1163 = vmatprep.subr.bf16.mxu0 0
        %1164 = vmatpush1.bf16.msra.mxu0 0
        %1165 = vmatprep.subr.bf16.mxu0 0
        %1166 = vmatpush1.bf16.msra.mxu0 0
        %1167 = vmatprep.subr.bf16.mxu0 0
        %1168 = vmatpush1.bf16.msra.mxu0 0
        %1169 = vmatprep.subr.bf16.mxu0 0
        %1170 = vmatpush1.bf16.msra.mxu0 0
        %1171 = vmatprep.subr.bf16.mxu0 0
        %1172 = vmatpush1.bf16.msra.mxu0 0
        %1173 = vmatprep.subr.bf16.mxu0 0
        %1174 = vmatpush1.bf16.msra.mxu0 0
        %1175 = vmatprep.subr.bf16.mxu0 0
        %1176 = vmatpush1.bf16.msra.mxu0 0
        %1177 = vmatprep.subr.bf16.mxu0 0
        %1178 = vmatpush1.bf16.msra.mxu0 0
        %1179 = vmatprep.subr.bf16.mxu0 0
        %1180 = vmatpush1.bf16.msra.mxu0 0
        %1181 = vmatprep.subr.bf16.mxu0 0
        %1182 = vmatpush1.bf16.msra.mxu0 0
        %1183 = vmatprep.subr.bf16.mxu0 0
        %1184 = vmatpush1.bf16.msra.mxu0 0
        %1185 = vmatprep.subr.bf16.mxu0 0
        %1186 = vmatpush1.bf16.msra.mxu0 0
        %1187 = vmatprep.subr.bf16.mxu0 0
        %1188 = vmatpush1.bf16.msra.mxu0 0
        %1189 = vmatprep.subr.bf16.mxu0 0
        %1190 = vmatpush1.bf16.msra.mxu0 0
        %1191 = vmatprep.subr.bf16.mxu0 0
        %1192 = vmatpush1.bf16.msra.mxu0 0
        %1193 = vmatprep.mubr.bf16.mxu0 0
        %1194 = vmatmul.mubr.bf16.gmra.mrb[0].mxu0 %v1153
        %v1195 = vpop.f32.mrb[0].mxu0
        %v1196 = vadd.f32 0.0, %v1195
        %v1197 = vpop.f32.mrb[0].mxu0
        %v1198 = vadd.f32 0.0, %v1197
        %v1199 = vpop.f32.mrb[0].mxu0
        %v1200 = vpop.f32.mrb[0].mxu0
        %1201 = vdwg.mxu0
        %v1202 = vadd.f32 %v1134, %v1196
        %v1203 = vadd.f32 %v1136, %v1198
        %1204 = vrot.lane.b32.xlu0 %v1013, 1
        %v1205 = vpop.permute.xlu0 %1204
        %1206 = vrot.lane.b32.xlu0 %v1014, 1
        %v1207 = vpop.permute.xlu0 %1206
        %v1208 = vsel %vm535, %v1205, %v1207
        %v1209 = vsel %vm535, %v1207, %v1205
        %v1210 = vmul.f32 %v1209, %v541
        %v1211 = vmul.f32 %v1208, %v545
        %v1212 = vpack.c.bf16 %v1210, %v1210
        %v1213 = vpack.c.bf16 %v1211, %v1211
        %s1214 = scalar_lea.vmem %s5, 12
        %v1215 = vld [vmem:[%s1214] sm:$0xf]
        %v1217 = vsel %vm1038, %v1215, 0
        %v1220 = vsel %vm1042, %v1212, 0
        %v1223 = vsel %vm1042, %v1213, 0
        %1225 = vmatprep.subr.bf16.mxu0 %v1223
        %1226 = vmatpush1.bf16.msra.mxu0 %v1220
        %1227 = vmatprep.subr.bf16.mxu0 0
        %1228 = vmatpush1.bf16.msra.mxu0 0
        %1229 = vmatprep.subr.bf16.mxu0 0
        %1230 = vmatpush1.bf16.msra.mxu0 0
        %1231 = vmatprep.subr.bf16.mxu0 0
        %1232 = vmatpush1.bf16.msra.mxu0 0
        %1233 = vmatprep.subr.bf16.mxu0 0
        %1234 = vmatpush1.bf16.msra.mxu0 0
        %1235 = vmatprep.subr.bf16.mxu0 0
        %1236 = vmatpush1.bf16.msra.mxu0 0
        %1237 = vmatprep.subr.bf16.mxu0 0
        %1238 = vmatpush1.bf16.msra.mxu0 0
        %1239 = vmatprep.subr.bf16.mxu0 0
        %1240 = vmatpush1.bf16.msra.mxu0 0
        %1241 = vmatprep.subr.bf16.mxu0 0
        %1242 = vmatpush1.bf16.msra.mxu0 0
        %1243 = vmatprep.subr.bf16.mxu0 0
        %1244 = vmatpush1.bf16.msra.mxu0 0
        %1245 = vmatprep.subr.bf16.mxu0 0
        %1246 = vmatpush1.bf16.msra.mxu0 0
        %1247 = vmatprep.subr.bf16.mxu0 0
        %1248 = vmatpush1.bf16.msra.mxu0 0
        %1249 = vmatprep.subr.bf16.mxu0 0
        %1250 = vmatpush1.bf16.msra.mxu0 0
        %1251 = vmatprep.subr.bf16.mxu0 0
        %1252 = vmatpush1.bf16.msra.mxu0 0
        %1253 = vmatprep.subr.bf16.mxu0 0
        %1254 = vmatpush1.bf16.msra.mxu0 0
        %1255 = vmatprep.subr.bf16.mxu0 0
        %1256 = vmatpush1.bf16.msra.mxu0 0
        %1257 = vmatprep.mubr.bf16.mxu0 0
        %1258 = vmatmul.mubr.bf16.gmra.mrb[0].mxu0 %v1217
        %v1259 = vpop.f32.mrb[0].mxu0
        %v1260 = vadd.f32 0.0, %v1259
        %v1261 = vpop.f32.mrb[0].mxu0
        %v1262 = vadd.f32 0.0, %v1261
        %v1263 = vpop.f32.mrb[0].mxu0
        %v1264 = vpop.f32.mrb[0].mxu0
        %1265 = vdwg.mxu0
        %v1266 = vadd.f32 %v1202, %v1260
        %v1267 = vadd.f32 %v1203, %v1262
        %v1268 = vpack.c.bf16 %v1013, %v1013
        %v1269 = vpack.c.bf16 %v1014, %v1014
        %s1270 = scalar_lea.vmem %s5, 16
        %v1271 = vld [vmem:[%s1270] sm:$0xf]
        %v1273 = vsel %vm1038, %v1271, 0
        %v1276 = vsel %vm1042, %v1268, 0
        %v1279 = vsel %vm1042, %v1269, 0
        %1281 = vmatprep.subr.bf16.mxu0 %v1279
        %1282 = vmatpush1.bf16.msra.mxu0 %v1276
        %1283 = vmatprep.subr.bf16.mxu0 0
        %1284 = vmatpush1.bf16.msra.mxu0 0
        %1285 = vmatprep.subr.bf16.mxu0 0
        %1286 = vmatpush1.bf16.msra.mxu0 0
        %1287 = vmatprep.subr.bf16.mxu0 0
        %1288 = vmatpush1.bf16.msra.mxu0 0
        %1289 = vmatprep.subr.bf16.mxu0 0
        %1290 = vmatpush1.bf16.msra.mxu0 0
        %1291 = vmatprep.subr.bf16.mxu0 0
        %1292 = vmatpush1.bf16.msra.mxu0 0
        %1293 = vmatprep.subr.bf16.mxu0 0
        %1294 = vmatpush1.bf16.msra.mxu0 0
        %1295 = vmatprep.subr.bf16.mxu0 0
        %1296 = vmatpush1.bf16.msra.mxu0 0
        %1297 = vmatprep.subr.bf16.mxu0 0
        %1298 = vmatpush1.bf16.msra.mxu0 0
        %1299 = vmatprep.subr.bf16.mxu0 0
        %1300 = vmatpush1.bf16.msra.mxu0 0
        %1301 = vmatprep.subr.bf16.mxu0 0
        %1302 = vmatpush1.bf16.msra.mxu0 0
        %1303 = vmatprep.subr.bf16.mxu0 0
        %1304 = vmatpush1.bf16.msra.mxu0 0
        %1305 = vmatprep.subr.bf16.mxu0 0
        %1306 = vmatpush1.bf16.msra.mxu0 0
        %1307 = vmatprep.subr.bf16.mxu0 0
        %1308 = vmatpush1.bf16.msra.mxu0 0
        %1309 = vmatprep.subr.bf16.mxu0 0
        %1310 = vmatpush1.bf16.msra.mxu0 0
        %1311 = vmatprep.subr.bf16.mxu0 0
        %1312 = vmatpush1.bf16.msra.mxu0 0
        %1313 = vmatprep.mubr.bf16.mxu0 0
        %1314 = vmatmul.mubr.bf16.gmra.mrb[0].mxu0 %v1273
        %v1315 = vpop.f32.mrb[0].mxu0
        %v1316 = vadd.f32 0.0, %v1315
        %v1317 = vpop.f32.mrb[0].mxu0
        %v1318 = vadd.f32 0.0, %v1317
        %v1319 = vpop.f32.mrb[0].mxu0
        %v1320 = vpop.f32.mrb[0].mxu0
        %1321 = vdwg.mxu0
        %v1322 = vadd.f32 %v1266, %v1316
        %v1323 = vadd.f32 %v1267, %v1318
        %1324 = vrot.lane.b32.xlu0 %v1013, 127
        %v1325 = vpop.permute.xlu0 %1324
        %1326 = vrot.lane.b32.xlu0 %v1014, 127
        %v1327 = vpop.permute.xlu0 %1326
        %v1328 = vsel %vm664, %v1325, %v1327
        %v1329 = vsel %vm664, %v1327, %v1325
        %v1330 = vmul.f32 %v1328, %v670
        %v1331 = vmul.f32 %v1329, %v674
        %v1332 = vpack.c.bf16 %v1330, %v1330
        %v1333 = vpack.c.bf16 %v1331, %v1331
        %s1334 = scalar_lea.vmem %s5, 20
        %v1335 = vld [vmem:[%s1334] sm:$0xf]
        %v1337 = vsel %vm1038, %v1335, 0
        %v1340 = vsel %vm1042, %v1332, 0
        %v1343 = vsel %vm1042, %v1333, 0
        %1345 = vmatprep.subr.bf16.mxu0 %v1343
        %1346 = vmatpush1.bf16.msra.mxu0 %v1340
        %1347 = vmatprep.subr.bf16.mxu0 0
        %1348 = vmatpush1.bf16.msra.mxu0 0
        %1349 = vmatprep.subr.bf16.mxu0 0
        %1350 = vmatpush1.bf16.msra.mxu0 0
        %1351 = vmatprep.subr.bf16.mxu0 0
        %1352 = vmatpush1.bf16.msra.mxu0 0
        %1353 = vmatprep.subr.bf16.mxu0 0
        %1354 = vmatpush1.bf16.msra.mxu0 0
        %1355 = vmatprep.subr.bf16.mxu0 0
        %1356 = vmatpush1.bf16.msra.mxu0 0
        %1357 = vmatprep.subr.bf16.mxu0 0
        %1358 = vmatpush1.bf16.msra.mxu0 0
        %1359 = vmatprep.subr.bf16.mxu0 0
        %1360 = vmatpush1.bf16.msra.mxu0 0
        %1361 = vmatprep.subr.bf16.mxu0 0
        %1362 = vmatpush1.bf16.msra.mxu0 0
        %1363 = vmatprep.subr.bf16.mxu0 0
        %1364 = vmatpush1.bf16.msra.mxu0 0
        %1365 = vmatprep.subr.bf16.mxu0 0
        %1366 = vmatpush1.bf16.msra.mxu0 0
        %1367 = vmatprep.subr.bf16.mxu0 0
        %1368 = vmatpush1.bf16.msra.mxu0 0
        %1369 = vmatprep.subr.bf16.mxu0 0
        %1370 = vmatpush1.bf16.msra.mxu0 0
        %1371 = vmatprep.subr.bf16.mxu0 0
        %1372 = vmatpush1.bf16.msra.mxu0 0
        %1373 = vmatprep.subr.bf16.mxu0 0
        %1374 = vmatpush1.bf16.msra.mxu0 0
        %1375 = vmatprep.subr.bf16.mxu0 0
        %1376 = vmatpush1.bf16.msra.mxu0 0
        %1377 = vmatprep.mubr.bf16.mxu0 0
        %1378 = vmatmul.mubr.bf16.gmra.mrb[0].mxu0 %v1337
        %v1379 = vpop.f32.mrb[0].mxu0
        %v1380 = vadd.f32 0.0, %v1379
        %v1381 = vpop.f32.mrb[0].mxu0
        %v1382 = vadd.f32 0.0, %v1381
        %v1383 = vpop.f32.mrb[0].mxu0
        %v1384 = vpop.f32.mrb[0].mxu0
        %1385 = vdwg.mxu0
        %v1386 = vadd.f32 %v1322, %v1380
        %v1387 = vadd.f32 %v1323, %v1382
        %1388 = vrot.lane.b32.xlu0 %v1013, 113
        %v1389 = vpop.permute.xlu0 %1388
        %1390 = vrot.lane.b32.xlu0 %v1014, 113
        %v1391 = vpop.permute.xlu0 %1390
        %v1392 = vsel %vm737, %v1389, %v1391
        %v1393 = vsel %vm737, %v1391, %v1389
        %v1394 = vmul.f32 %v1392, %v743
        %v1395 = vmul.f32 %v1393, %v747
        %v1396 = vpack.c.bf16 %v1394, %v1394
        %v1397 = vpack.c.bf16 %v1395, %v1395
        %s1398 = scalar_lea.vmem %s5, 24
        %v1399 = vld [vmem:[%s1398] sm:$0xf]
        %v1401 = vsel %vm1038, %v1399, 0
        %v1404 = vsel %vm1042, %v1396, 0
        %v1407 = vsel %vm1042, %v1397, 0
        %1409 = vmatprep.subr.bf16.mxu0 %v1407
        %1410 = vmatpush1.bf16.msra.mxu0 %v1404
        %1411 = vmatprep.subr.bf16.mxu0 0
        %1412 = vmatpush1.bf16.msra.mxu0 0
        %1413 = vmatprep.subr.bf16.mxu0 0
        %1414 = vmatpush1.bf16.msra.mxu0 0
        %1415 = vmatprep.subr.bf16.mxu0 0
        %1416 = vmatpush1.bf16.msra.mxu0 0
        %1417 = vmatprep.subr.bf16.mxu0 0
        %1418 = vmatpush1.bf16.msra.mxu0 0
        %1419 = vmatprep.subr.bf16.mxu0 0
        %1420 = vmatpush1.bf16.msra.mxu0 0
        %1421 = vmatprep.subr.bf16.mxu0 0
        %1422 = vmatpush1.bf16.msra.mxu0 0
        %1423 = vmatprep.subr.bf16.mxu0 0
        %1424 = vmatpush1.bf16.msra.mxu0 0
        %1425 = vmatprep.subr.bf16.mxu0 0
        %1426 = vmatpush1.bf16.msra.mxu0 0
        %1427 = vmatprep.subr.bf16.mxu0 0
        %1428 = vmatpush1.bf16.msra.mxu0 0
        %1429 = vmatprep.subr.bf16.mxu0 0
        %1430 = vmatpush1.bf16.msra.mxu0 0
        %1431 = vmatprep.subr.bf16.mxu0 0
        %1432 = vmatpush1.bf16.msra.mxu0 0
        %1433 = vmatprep.subr.bf16.mxu0 0
        %1434 = vmatpush1.bf16.msra.mxu0 0
        %1435 = vmatprep.subr.bf16.mxu0 0
        %1436 = vmatpush1.bf16.msra.mxu0 0
        %1437 = vmatprep.subr.bf16.mxu0 0
        %1438 = vmatpush1.bf16.msra.mxu0 0
        %1439 = vmatprep.subr.bf16.mxu0 0
        %1440 = vmatpush1.bf16.msra.mxu0 0
        %1441 = vmatprep.mubr.bf16.mxu0 0
        %1442 = vmatmul.mubr.bf16.gmra.mrb[0].mxu0 %v1401
        %v1443 = vpop.f32.mrb[0].mxu0
        %v1444 = vadd.f32 0.0, %v1443
        %v1445 = vpop.f32.mrb[0].mxu0
        %v1446 = vadd.f32 0.0, %v1445
        %v1447 = vpop.f32.mrb[0].mxu0
        %v1448 = vpop.f32.mrb[0].mxu0
        %1449 = vdwg.mxu0
        %v1450 = vadd.f32 %v1386, %v1444
        %v1451 = vadd.f32 %v1387, %v1446
        %1452 = vrot.lane.b32.xlu0 %v1013, 112
        %v1453 = vpop.permute.xlu0 %1452
        %1454 = vrot.lane.b32.xlu0 %v1014, 112
        %v1455 = vpop.permute.xlu0 %1454
        %v1456 = vsel %vm810, %v1453, %v1455
        %v1457 = vsel %vm810, %v1455, %v1453
        %v1458 = vmul.f32 %v1456, %v816
        %v1459 = vmul.f32 %v1457, %v820
        %v1460 = vpack.c.bf16 %v1458, %v1458
        %v1461 = vpack.c.bf16 %v1459, %v1459
        %s1462 = scalar_lea.vmem %s5, 28
        %v1463 = vld [vmem:[%s1462] sm:$0xf]
        %v1465 = vsel %vm1038, %v1463, 0
        %v1468 = vsel %vm1042, %v1460, 0
        %v1471 = vsel %vm1042, %v1461, 0
        %1473 = vmatprep.subr.bf16.mxu0 %v1471
        %1474 = vmatpush1.bf16.msra.mxu0 %v1468
        %1475 = vmatprep.subr.bf16.mxu0 0
        %1476 = vmatpush1.bf16.msra.mxu0 0
        %1477 = vmatprep.subr.bf16.mxu0 0
        %1478 = vmatpush1.bf16.msra.mxu0 0
        %1479 = vmatprep.subr.bf16.mxu0 0
        %1480 = vmatpush1.bf16.msra.mxu0 0
        %1481 = vmatprep.subr.bf16.mxu0 0
        %1482 = vmatpush1.bf16.msra.mxu0 0
        %1483 = vmatprep.subr.bf16.mxu0 0
        %1484 = vmatpush1.bf16.msra.mxu0 0
        %1485 = vmatprep.subr.bf16.mxu0 0
        %1486 = vmatpush1.bf16.msra.mxu0 0
        %1487 = vmatprep.subr.bf16.mxu0 0
        %1488 = vmatpush1.bf16.msra.mxu0 0
        %1489 = vmatprep.subr.bf16.mxu0 0
        %1490 = vmatpush1.bf16.msra.mxu0 0
        %1491 = vmatprep.subr.bf16.mxu0 0
        %1492 = vmatpush1.bf16.msra.mxu0 0
        %1493 = vmatprep.subr.bf16.mxu0 0
        %1494 = vmatpush1.bf16.msra.mxu0 0
        %1495 = vmatprep.subr.bf16.mxu0 0
        %1496 = vmatpush1.bf16.msra.mxu0 0
        %1497 = vmatprep.subr.bf16.mxu0 0
        %1498 = vmatpush1.bf16.msra.mxu0 0
        %1499 = vmatprep.subr.bf16.mxu0 0
        %1500 = vmatpush1.bf16.msra.mxu0 0
        %1501 = vmatprep.subr.bf16.mxu0 0
        %1502 = vmatpush1.bf16.msra.mxu0 0
        %1503 = vmatprep.subr.bf16.mxu0 0
        %1504 = vmatpush1.bf16.msra.mxu0 0
        %1505 = vmatprep.mubr.bf16.mxu0 0
        %1506 = vmatmul.mubr.bf16.gmra.mrb[0].mxu0 %v1465
        %v1507 = vpop.f32.mrb[0].mxu0
        %v1508 = vadd.f32 0.0, %v1507
        %v1509 = vpop.f32.mrb[0].mxu0
        %v1510 = vadd.f32 0.0, %v1509
        %v1511 = vpop.f32.mrb[0].mxu0
        %v1512 = vpop.f32.mrb[0].mxu0
        %1513 = vdwg.mxu0
        %v1514 = vadd.f32 %v1450, %v1508
        %v1515 = vadd.f32 %v1451, %v1510
        %1516 = vrot.lane.b32.xlu0 %v1013, 111
        %v1517 = vpop.permute.xlu0 %1516
        %1518 = vrot.lane.b32.xlu0 %v1014, 111
        %v1519 = vpop.permute.xlu0 %1518
        %v1520 = vsel %vm883, %v1517, %v1519
        %v1521 = vsel %vm883, %v1519, %v1517
        %v1522 = vmul.f32 %v1520, %v889
        %v1523 = vmul.f32 %v1521, %v893
        %v1524 = vpack.c.bf16 %v1522, %v1522
        %v1525 = vpack.c.bf16 %v1523, %v1523
        %s1526 = scalar_lea.vmem %s5, 32
        %v1527 = vld [vmem:[%s1526] sm:$0xf]
        %v1529 = vsel %vm1038, %v1527, 0
        %v1532 = vsel %vm1042, %v1524, 0
        %v1535 = vsel %vm1042, %v1525, 0
        %1537 = vmatprep.subr.bf16.mxu0 %v1535
        %1538 = vmatpush1.bf16.msra.mxu0 %v1532
        %1539 = vmatprep.subr.bf16.mxu0 0
        %1540 = vmatpush1.bf16.msra.mxu0 0
        %1541 = vmatprep.subr.bf16.mxu0 0
        %1542 = vmatpush1.bf16.msra.mxu0 0
        %1543 = vmatprep.subr.bf16.mxu0 0
        %1544 = vmatpush1.bf16.msra.mxu0 0
        %1545 = vmatprep.subr.bf16.mxu0 0
        %1546 = vmatpush1.bf16.msra.mxu0 0
        %1547 = vmatprep.subr.bf16.mxu0 0
        %1548 = vmatpush1.bf16.msra.mxu0 0
        %1549 = vmatprep.subr.bf16.mxu0 0
        %1550 = vmatpush1.bf16.msra.mxu0 0
        %1551 = vmatprep.subr.bf16.mxu0 0
        %1552 = vmatpush1.bf16.msra.mxu0 0
        %1553 = vmatprep.subr.bf16.mxu0 0
        %1554 = vmatpush1.bf16.msra.mxu0 0
        %1555 = vmatprep.subr.bf16.mxu0 0
        %1556 = vmatpush1.bf16.msra.mxu0 0
        %1557 = vmatprep.subr.bf16.mxu0 0
        %1558 = vmatpush1.bf16.msra.mxu0 0
        %1559 = vmatprep.subr.bf16.mxu0 0
        %1560 = vmatpush1.bf16.msra.mxu0 0
        %1561 = vmatprep.subr.bf16.mxu0 0
        %1562 = vmatpush1.bf16.msra.mxu0 0
        %1563 = vmatprep.subr.bf16.mxu0 0
        %1564 = vmatpush1.bf16.msra.mxu0 0
        %1565 = vmatprep.subr.bf16.mxu0 0
        %1566 = vmatpush1.bf16.msra.mxu0 0
        %1567 = vmatprep.subr.bf16.mxu0 0
        %1568 = vmatpush1.bf16.msra.mxu0 0
        %1569 = vmatprep.mubr.bf16.mxu0 0
        %1570 = vmatmul.mubr.bf16.gmra.mrb[0].mxu0 %v1529
        %v1571 = vpop.f32.mrb[0].mxu0
        %v1572 = vadd.f32 0.0, %v1571
        %v1573 = vpop.f32.mrb[0].mxu0
        %v1574 = vadd.f32 0.0, %v1573
        %v1575 = vpop.f32.mrb[0].mxu0
        %v1576 = vpop.f32.mrb[0].mxu0
        %1577 = vdwg.mxu0
        %v1578 = vadd.f32 %v1514, %v1572
        %v1579 = vadd.f32 %v1515, %v1574
        %v1580 = vadd.f32 %v1578, %v1579
        %1581 = vadd.xlane.f32.xlu0 %v1580
        %v1582 = vpop.xlane.xlu0 %1581
        %v1583 = vrot.slane %v1582, 4
        %v1584 = vadd.f32 %v1582, %v1583
        %v1585 = vrot.slane %v1584, 2
        %v1586 = vadd.f32 %v1584, %v1585
        %v1587 = vrot.slane %v1586, 1
        %v1588 = vadd.f32 %v1586, %v1587
        %s1589 = vtos %v1588
        %v1590 = vrcp.pop 2048.0
        %s1591 = vtos %v1590
        %s1592 = smul.f32 %s1589, %s1591
        %v1593 = vstv %s1592
        %v1594 = vsub.f32 %v1578, %v1593
        %v1595 = vsub.f32 %v1579, %v1593
        %v1596 = vmul.f32 %v1594, %v1594
        %v1597 = vmul.f32 %v1595, %v1595
        %v1598 = vadd.f32 %v1596, %v1597
        %1599 = vadd.xlane.f32.xlu0 %v1598
        %v1600 = vpop.xlane.xlu0 %1599
        %v1601 = vrot.slane %v1600, 4
        %v1602 = vadd.f32 %v1600, %v1601
        %v1603 = vrot.slane %v1602, 2
        %v1604 = vadd.f32 %v1602, %v1603
        %v1605 = vrot.slane %v1604, 1
        %v1606 = vadd.f32 %v1604, %v1605
        %s1607 = vtos %v1606
        %v1608 = vrcp.pop 2048.0
        %s1609 = vtos %v1608
        %s1610 = smul.f32 %s1607, %s1609
        %s1611 = sadd.f32 %s1610, 1e-05
        %v1612 = vstv %s1611
        %v1613 = vrsqrt.pop %v1612
        %s1614 = vtos %v1613
        %v1615 = vld [vmem:[%s6] sm:$0xff]
        %v1616 = vstv %s1614
        %v1617 = vmul.f32 %v1616, %v1615
        %1619 = vset.pattern.permute.xlu0 0
        %1620 = vperm.xlu0 %1619, %v1617
        %v1621 = vpop.permute.xlu0 %1620
        %v1623 = vmul.f32 %v1594, %v1621
        %v1624 = vmul.f32 %v1595, %v1621
        %v1625 = vld [vmem:[%s7] sm:$0xff]
        %1627 = vset.pattern.permute.xlu0 0
        %1628 = vperm.xlu0 %1627, %v1625
        %v1629 = vpop.permute.xlu0 %1628
        %v1631 = vadd.f32 %v1623, %v1629
        %v1632 = vadd.f32 %v1624, %v1629
        %1633 = vst [vmem:[%s298] sm:$0xff] %v1631
        %1634 = vst [vmem:[%s298 + $0x8] sm:$0xff] %v1632
        %s1635 = sand.u32 %s203, 1
        %s1636 = scalar_lea.sflag [#allocation3], %s1635
        %s1637 = sand.u32 %s203, 1
        %s1638 = smul.addr %s1637, 16
        %s1639 = scalar_lea.vmem [#allocation2], %s1638
        // Predicated region
        $region53: #{tpu_custom_call.1} parent=51 // pred_check
          %p1640 = pneg %p213
        $region54: #{tpu_custom_call.1} parent=51 // pred_check_branch
          %1642 = sbr.rel (%p1640) target = $region56
        $region55: #{tpu_custom_call.1} parent=51 // pred_region
          %s1644 = ssub.s32 256, 256
          %1645 = vsyncadd %s1636, %s1644
          %s1646 = smul.addr %s22, 2
          %s1647 = smul.addr %s1646, 128
          %s1648 = scalar_lea.hbm %s8, %s1647
          %s1650 = sshll.u32 %s1639, 4
          %s1651 = int_to_ptr.vmem [resolvable:$true] %s1650
          %1653 = dma.vmem_to_hbm [thread:$0]  %s1651, 256, %s1648, %s1636
        $region56: #{tpu_custom_call.1} parent=51 // pred_fallthru
          _
      $region52: #{tpu_custom_call.1} parent=5 // pred_fallthru
        _
      %p1654 = scmp.le.s32.totalorder 2, %s17
      // Predicated region
      $region57: #{tpu_custom_call.1} parent=5 // pred_check
        %p1655 = pneg %p1654
      $region58: #{tpu_custom_call.1} parent=5 // pred_check_branch
        %1657 = sbr.rel (%p1655) target = $region60
      $region59: #{tpu_custom_call.1} parent=5 // pred_region
        %s1658 = ssub.s32 %s17, 2
        // Predicated region
        $region61: #{tpu_custom_call.1} parent=59 // pred_check
          %p1659 = pneg %p219
        $region62: #{tpu_custom_call.1} parent=59 // pred_check_branch
          %1661 = sbr.rel (%p1659) target = $region64
        $region63: #{tpu_custom_call.1} parent=59 // pred_region
          %s1662 = sand.u32 %s204, 1
          %s1663 = scalar_lea.sflag [#allocation3], %s1662
          %s1664 = sand.u32 %s204, 1
          %s1665 = smul.addr %s1664, 16
          %s1666 = scalar_lea.vmem [#allocation2], %s1665
          %1667 = dma.done %s1663, 256
        $region64: #{tpu_custom_call.1} parent=59 // pred_fallthru
          _
      $region60: #{tpu_custom_call.1} parent=5 // pred_fallthru
        _
    $region6: #{tpu_custom_call.1} parent=1 // loop_footer
      %s21 = sadd.s32 1, %s17
    $region7: #{tpu_custom_call.1} parent=1 // loop_footer_branch
      %16 = sbr.rel target = $region3
    $region8: #{tpu_custom_call.1} parent=1 // loop_exit
      _
    %1668 = vsyncpa [#allocation3], 1
    %s1669 = scalar_lea.sflag [#allocation3], 1
    %1670 = vsyncpa %s1669, 1

</llo_original>
